<compile_context>
chip_gen: v6e
topology: v6e:2x2x1
jax: 0.10.0
libtpu: 0.0.40
codegen_flags: <defaults>
</compile_context>

<pallas_src>
import functools

import jax
import jax.numpy as jnp
import numpy as np
from jax.experimental import pallas as pl
from jax.experimental.pallas import tpu as pltpu

COMPUTE_DTYPE = jnp.bfloat16          # MXU input dtype (f32 accumulation everywhere)


# ----------------------------- shared math helpers -----------------------------

def _layernorm(x, g, b, eps=1e-5):
    # PyTorch nn.LayerNorm semantics (biased variance, eps=1e-5) over the last axis.
    mu = jnp.mean(x, axis=-1, keepdims=True)
    xc = x - mu
    var = jnp.mean(xc * xc, axis=-1, keepdims=True)
    return xc * jax.lax.rsqrt(var + eps) * g + b


def _gelu_exact(x):
    # nn.GELU() default (approximate='none'): 0.5*x*(1+erf(x/sqrt(2)))
    return 0.5 * x * (1.0 + jax.lax.erf(x * jnp.float32(0.7071067811865476)))


def _cdot(a, b):
    # bf16 MXU inputs, f32 accumulation.
    return jnp.dot(a.astype(COMPUTE_DTYPE), b.astype(COMPUTE_DTYPE),
                   preferred_element_type=jnp.float32)


# ----------------------------- the fused Pallas kernel -----------------------------

def vit_layers_kernel(x0_ref, lnag_ref, lnab_ref, wqkv_ref, wo_ref, bo_ref,
                      lnfg_ref, lnfb_ref, w1_ref, b1_ref, w2_ref, b2_ref,
                      out_ref, act_ref,
                      *, bt_size, n1p, n1, heads, dim_head, depth):
    d = pl.program_id(1)                       # depth step (innermost, state-carrying)
    inner = heads * dim_head
    scale = dim_head ** -0.5

    # ---- load this batch tile's initial activation into the resident scratch ----
    @pl.when(d == 0)
    def _():
        act_ref[...] = x0_ref[...]             # [M_tile, dim] f32

    x = act_ref[...]                           # resident activations, f32

    # ---- pre-norm multi-head self-attention + residual ----
    xn = _layernorm(x, lnag_ref[0], lnab_ref[0])
    qkv = _cdot(xn, wqkv_ref[0])                               # [M_tile, 3*inner] f32
    qkv = qkv.astype(COMPUTE_DTYPE).reshape(bt_size, n1p, 3 * inner)

    # additive mask on padded key columns (built in-kernel; no resident constant input)
    kidx = jax.lax.broadcasted_iota(jnp.int32, (1, 1, n1p), 2)
    kmask = jnp.where(kidx < n1, 0.0, -1e30).astype(jnp.float32)

    head_outs = []
    for h in range(heads):                     # static unrolled loop over heads only
        q_h = qkv[:, :, h * dim_head:(h + 1) * dim_head]
        k_h = qkv[:, :, inner + h * dim_head:inner + (h + 1) * dim_head]
        v_h = qkv[:, :, 2 * inner + h * dim_head:2 * inner + (h + 1) * dim_head]

        s = jnp.einsum("bqd,bkd->bqk", q_h, k_h,
                       preferred_element_type=jnp.float32) * scale   # [BT, n1p, n1p]
        s = s + kmask
        s = s - jnp.max(s, axis=-1, keepdims=True)
        p = jnp.exp(s)
        attn = p * pl.reciprocal(jnp.sum(p, axis=-1, keepdims=True), approx=True)
        o_h = jnp.einsum("bqk,bkd->bqd", attn.astype(COMPUTE_DTYPE), v_h,
                         preferred_element_type=jnp.float32)          # [BT, n1p, dh]
        head_outs.append(o_h)

    # Single lane-dense merge of all head outputs -> one output-projection matmul.
    o = jnp.concatenate(head_outs, axis=-1).reshape(bt_size * n1p, inner)
    x = x + _cdot(o, wo_ref[0]) + bo_ref[0]

    # ---- pre-norm MLP + residual ----
    xn2 = _layernorm(x, lnfg_ref[0], lnfb_ref[0])
    h1 = _gelu_exact(_cdot(xn2, w1_ref[0]) + b1_ref[0])
    x = x + _cdot(h1, w2_ref[0]) + b2_ref[0]
    act_ref[...] = x

    # ---- write this batch tile's final activations once, at the last layer ----
    @pl.when(d == depth - 1)
    def _():
        out_ref[...] = x


# ----------------------------- wrapper (pallas_call) -----------------------------

def _rearrange_patches(x_nchw, patch_size):
    # 'b c (h p1) (w p2) -> b (h w) (p1 p2 c)'
    B, C, H, W = x_nchw.shape
    p = patch_size
    hh, ww = H // p, W // p
    t = x_nchw.reshape(B, C, hh, p, ww, p).transpose(0, 2, 4, 3, 5, 1)
    return t.reshape(B, hh * ww, p * p * C)


def vit_forward_pallas(x_nchw, params, *, patch_size, heads, dim_head, batch_tile=1):
    f32 = jnp.float32
    cdt = COMPUTE_DTYPE

    tokens = _rearrange_patches(x_nchw, patch_size)            # [B, N, patch_dim]
    B, N, patch_dim = tokens.shape
    dim = params["w_embed"].shape[1]
    depth = params["wqkv"].shape[0]
    mlp_dim = params["w1"].shape[2]
    inner = heads * dim_head

    N1 = N + 1
    N1p = ((N1 + 15) // 16) * 16        # pad token rows to x16 (bf16 sublane packing)

    BT = batch_tile
    assert B % BT == 0, "batch must be divisible by batch_tile"
    num_bt = B // BT
    M_tile = BT * N1p

    # ---- patch embedding + cls token + positional embedding (plain XLA, runs once) ----
    xn = _layernorm(tokens, params["ln_patch_g"], params["ln_patch_b"])
    emb = _cdot(xn, params["w_embed"]) + params["b_embed"]
    emb = _layernorm(emb, params["ln_emb_g"], params["ln_emb_b"])
    cls = jnp.broadcast_to(params["cls"][None], (B, 1, dim))
    x0 = jnp.concatenate([cls, emb], axis=1) + params["pos"][None, :N1]   # [B, N1, dim]
    x0 = jnp.pad(x0, ((0, 0), (0, N1p - N1), (0, 0)))                     # zero pad rows
    x0 = x0.reshape(B * N1p, dim).astype(f32)

    # ---- fused transformer stack: grid = (batch tiles, depth) ----
    act_spec = pl.BlockSpec((M_tile, dim), lambda b, d: (b, 0))

    def lspec(shape):                   # per-layer slice of depth-stacked weights
        return pl.BlockSpec((1,) + tuple(shape[1:]), lambda b, d: (d, 0, 0))

    kern = functools.partial(vit_layers_kernel, bt_size=BT, n1p=N1p, n1=N1,
                             heads=heads, dim_head=dim_head, depth=depth)

    x_out = pl.pallas_call(
        kern,
        out_shape=jax.ShapeDtypeStruct((B * N1p, dim), f32),
        grid=(num_bt, depth),
        in_specs=[
            act_spec,                                              # x0 (per batch tile)
            lspec((depth, 1, dim)), lspec((depth, 1, dim)),        # ln_attn g/b
            lspec((depth, dim, 3 * inner)),                        # wqkv
            lspec((depth, inner, dim)), lspec((depth, 1, dim)),    # wo, bo
            lspec((depth, 1, dim)), lspec((depth, 1, dim)),        # ln_ff g/b
            lspec((depth, dim, mlp_dim)), lspec((depth, 1, mlp_dim)),  # w1, b1
            lspec((depth, mlp_dim, dim)), lspec((depth, 1, dim)),  # w2, b2
        ],
        out_specs=act_spec,
        scratch_shapes=[
            pltpu.VMEM((M_tile, dim), f32),    # resident activations for one batch tile
        ],
        compiler_params=pltpu.CompilerParams(
            dimension_semantics=("parallel", "arbitrary"),   # batch tiles || , depth seq
            vmem_limit_bytes=56 * 1024 * 1024),              # safe on v7x (64 MiB) too
    )(
        x0,
        params["ln_attn_g"], params["ln_attn_b"],
        params["wqkv"].astype(cdt),
        params["wo"].astype(cdt), params["bo"],
        params["ln_ff_g"], params["ln_ff_b"],
        params["w1"].astype(cdt), params["b1"],
        params["w2"].astype(cdt), params["b2"],
    )

    # ---- final LayerNorm -> mean pool over real tokens -> mlp_head (plain XLA) ----
    x_seq = x_out.reshape(B, N1p, dim)[:, :N1]
    xf = _layernorm(x_seq, params["ln_final_g"], params["ln_final_b"])
    pooled = xf.mean(axis=1)                                   # pool='mean'
    return _cdot(pooled, params["w_head"]) + params["b_head"]


# ----------------------------- pure-JAX reference -----------------------------

def vit_reference(x_nchw, params, *, patch_size, heads, dim_head):
    tokens = _rearrange_patches(x_nchw, patch_size)
    B, N, _ = tokens.shape
    dim = params["w_embed"].shape[1]
    depth = params["wqkv"].shape[0]
    inner = heads * dim_head
    N1 = N + 1
    scale = dim_head ** -0.5

    xn = _layernorm(tokens, params["ln_patch_g"], params["ln_patch_b"])
    emb = _cdot(xn, params["w_embed"]) + params["b_embed"]
    emb = _layernorm(emb, params["ln_emb_g"], params["ln_emb_b"])
    cls = jnp.broadcast_to(params["cls"][None], (B, 1, dim))
    x = jnp.concatenate([cls, emb], axis=1) + params["pos"][None]

    for d in range(depth):
        lnx = _layernorm(x, params["ln_attn_g"][d], params["ln_attn_b"][d])
        qkv = _cdot(lnx, params["wqkv"][d]).astype(COMPUTE_DTYPE)
        q, k, v = jnp.split(qkv, 3, axis=-1)
        sh = lambda t: t.reshape(B, N1, heads, dim_head).transpose(0, 2, 1, 3)
        q, k, v = sh(q), sh(k), sh(v)
        dots = jnp.einsum("bhqd,bhkd->bhqk", q, k,
                          preferred_element_type=jnp.float32) * scale
        attn = jax.nn.softmax(dots, axis=-1)
        o = jnp.einsum("bhqk,bhkd->bhqd", attn.astype(COMPUTE_DTYPE), v,
                       preferred_element_type=jnp.float32)
        o = o.transpose(0, 2, 1, 3).reshape(B, N1, inner)
        x = x + _cdot(o, params["wo"][d]) + params["bo"][d]
        lnf = _layernorm(x, params["ln_ff_g"][d], params["ln_ff_b"][d])
        h = _gelu_exact(_cdot(lnf, params["w1"][d]) + params["b1"][d])
        x = x + _cdot(h, params["w2"][d]) + params["b2"][d]

    xf = _layernorm(x, params["ln_final_g"], params["ln_final_b"])
    pooled = xf.mean(axis=1)                                    # pool='mean'
    return _cdot(pooled, params["w_head"]) + params["b_head"]


# ----------------------------- deterministic params -----------------------------

def init_params(key, *, image_size, patch_size, out_size, dim, depth, heads,
                dim_head, mlp_dim, channels):
    num_patches = (image_size // patch_size) ** 2
    patch_dim = channels * patch_size * patch_size
    inner = heads * dim_head
    f32 = jnp.float32
    ks = iter(jax.random.split(key, 32))

    def nrm(shape, s):
        return (s * jax.random.normal(next(ks), shape)).astype(f32)

    def gamma(shape):
        return (1.0 + 0.1 * jax.random.normal(next(ks), shape)).astype(f32)

    def beta(shape):
        return (0.05 * jax.random.normal(next(ks), shape)).astype(f32)

    return {
        "ln_patch_g": gamma((1, patch_dim)), "ln_patch_b": beta((1, patch_dim)),
        "w_embed": nrm((patch_dim, dim), 0.05), "b_embed": beta((1, dim)),
        "ln_emb_g": gamma((1, dim)), "ln_emb_b": beta((1, dim)),
        "cls": nrm((1, dim), 1.0), "pos": nrm((num_patches + 1, dim), 1.0),
        "ln_attn_g": gamma((depth, 1, dim)), "ln_attn_b": beta((depth, 1, dim)),
        "wqkv": nrm((depth, dim, 3 * inner), 0.25),
        "wo": nrm((depth, inner, dim), 0.1), "bo": beta((depth, 1, dim)),
        "ln_ff_g": gamma((depth, 1, dim)), "ln_ff_b": beta((depth, 1, dim)),
        "w1": nrm((depth, dim, mlp_dim), 0.1), "b1": beta((depth, 1, mlp_dim)),
        "w2": nrm((depth, mlp_dim, dim), 0.1), "b2": beta((depth, 1, dim)),
        "ln_final_g": gamma((1, dim)), "ln_final_b": beta((1, dim)),
        "w_head": nrm((dim, out_size), 0.1), "b_head": beta((1, out_size)),
    }


# ----------------------------- main -----------------------------

if __name__ == "__main__":
    # Small config consistent with the module (VitConfig scaled down).
    IMAGE_SIZE, PATCH_SIZE, CHANNELS = 16, 8, 3
    OUT_SIZE, DIM, DEPTH, HEADS, DIM_HEAD, MLP_DIM = 16, 32, 2, 2, 16, 64
    BATCH = 2

    key = jax.random.PRNGKey(0)
    pkey, xkey = jax.random.split(key)
    params = init_params(pkey, image_size=IMAGE_SIZE, patch_size=PATCH_SIZE,
                         out_size=OUT_SIZE, dim=DIM, depth=DEPTH, heads=HEADS,
                         dim_head=DIM_HEAD, mlp_dim=MLP_DIM, channels=CHANNELS)
    x = jax.random.normal(xkey, (BATCH, CHANNELS, IMAGE_SIZE, IMAGE_SIZE), jnp.float32)

    fwd = jax.jit(functools.partial(vit_forward_pallas, patch_size=PATCH_SIZE,
                                    heads=HEADS, dim_head=DIM_HEAD, batch_tile=1))
    out = jax.block_until_ready(fwd(x, params))
    ref = jax.block_until_ready(
        vit_reference(x, params, patch_size=PATCH_SIZE, heads=HEADS, dim_head=DIM_HEAD))

    assert out.shape == (BATCH, OUT_SIZE)
    np.testing.assert_allclose(np.asarray(out), np.asarray(ref), rtol=1e-2, atol=1e-2)
    print("KERNEL_OK")
</pallas_src>

<mosaic_0001>
module attributes {stable_mosaic.version = 11 : i64} {
  func.func @vit_layers_kernel(%arg0: i32, %arg1: i32, %arg2: memref<16x32xf32, #tpu.memory_space<vmem>>, %arg3: memref<1x1x32xf32, #tpu.memory_space<vmem>>, %arg4: memref<1x1x32xf32, #tpu.memory_space<vmem>>, %arg5: memref<1x32x96xbf16, #tpu.memory_space<vmem>>, %arg6: memref<1x32x32xbf16, #tpu.memory_space<vmem>>, %arg7: memref<1x1x32xf32, #tpu.memory_space<vmem>>, %arg8: memref<1x1x32xf32, #tpu.memory_space<vmem>>, %arg9: memref<1x1x32xf32, #tpu.memory_space<vmem>>, %arg10: memref<1x32x64xbf16, #tpu.memory_space<vmem>>, %arg11: memref<1x1x64xf32, #tpu.memory_space<vmem>>, %arg12: memref<1x64x32xbf16, #tpu.memory_space<vmem>>, %arg13: memref<1x1x32xf32, #tpu.memory_space<vmem>>, %arg14: memref<16x32xf32, #tpu.memory_space<vmem>>, %arg15: memref<16x32xf32, #tpu.memory_space<vmem>>) attributes {dimension_semantics = [#tpu.dimension_semantics<parallel>, #tpu.dimension_semantics<arbitrary>], iteration_bounds = array<i64: 2, 2>, scalar_prefetch = 0 : i64, scratch_operands = 1 : i64, tpu.core_type = #tpu.core_type<tc>, window_params = [{transform_indices = @transform_0, window_bounds = array<i64: 16, 32>}, {transform_indices = @transform_1, window_bounds = array<i64: 1, 1, 32>}, {transform_indices = @transform_2, window_bounds = array<i64: 1, 1, 32>}, {transform_indices = @transform_3, window_bounds = array<i64: 1, 32, 96>}, {transform_indices = @transform_4, window_bounds = array<i64: 1, 32, 32>}, {transform_indices = @transform_5, window_bounds = array<i64: 1, 1, 32>}, {transform_indices = @transform_6, window_bounds = array<i64: 1, 1, 32>}, {transform_indices = @transform_7, window_bounds = array<i64: 1, 1, 32>}, {transform_indices = @transform_8, window_bounds = array<i64: 1, 32, 64>}, {transform_indices = @transform_9, window_bounds = array<i64: 1, 1, 64>}, {transform_indices = @transform_10, window_bounds = array<i64: 1, 64, 32>}, {transform_indices = @transform_11, window_bounds = array<i64: 1, 1, 32>}, {transform_indices = @transform_12, window_bounds = array<i64: 16, 32>}]} {
    %c0_i32 = arith.constant 0 : i32
    %0 = arith.cmpi eq, %arg1, %c0_i32 : i32
    %1 = arith.extui %0 : i1 to i32
    %c0_i32_0 = arith.constant 0 : i32
    %2 = arith.cmpi ne, %1, %c0_i32_0 : i32
    scf.if %2 {
      %c0_66 = arith.constant 0 : index
      %c0_67 = arith.constant 0 : index
      %144 = vector.load %arg2[%c0_66, %c0_67] : memref<16x32xf32, #tpu.memory_space<vmem>>, vector<16x32xf32>
      %c0_68 = arith.constant 0 : index
      %c0_69 = arith.constant 0 : index
      %145 = vector.load %arg15[%c0_68, %c0_69] : memref<16x32xf32, #tpu.memory_space<vmem>>, vector<16x32xf32>
      tpu.vector_store %arg15[%c0_68, %c0_69], %144 {strides = array<i32>} : memref<16x32xf32, #tpu.memory_space<vmem>>, vector<16x32xf32>,
    } else {
    }
    %c0 = arith.constant 0 : index
    %c0_1 = arith.constant 0 : index
    %3 = vector.load %arg15[%c0, %c0_1] : memref<16x32xf32, #tpu.memory_space<vmem>>, vector<16x32xf32>
    %c0_2 = arith.constant 0 : index
    %c0_3 = arith.constant 0 : index
    %c0_4 = arith.constant 0 : index
    %4 = vector.load %arg3[%c0_2, %c0_3, %c0_4] : memref<1x1x32xf32, #tpu.memory_space<vmem>>, vector<1x1x32xf32>
    %5 = vector.shape_cast %4 : vector<1x1x32xf32> to vector<1x32xf32>
    %c0_5 = arith.constant 0 : index
    %c0_6 = arith.constant 0 : index
    %c0_7 = arith.constant 0 : index
    %6 = vector.load %arg4[%c0_5, %c0_6, %c0_7] : memref<1x1x32xf32, #tpu.memory_space<vmem>>, vector<1x1x32xf32>
    %7 = vector.shape_cast %6 : vector<1x1x32xf32> to vector<1x32xf32>
    %cst = arith.constant dense<0.000000e+00> : vector<16xf32>
    %8 = vector.multi_reduction <add>, %3, %cst [1] : vector<16x32xf32> to vector<16xf32>
    %9 = vector.shape_cast %8 : vector<16xf32> to vector<16x1xf32>
    %cst_8 = arith.constant 3.200000e+01 : f32
    %10 = vector.broadcast %cst_8 : f32 to vector<16x1xf32>
    %11 = arith.divf %9, %10 : vector<16x1xf32>
    %12 = vector.broadcast %11 : vector<16x1xf32> to vector<16x32xf32>
    %13 = arith.subf %3, %12 : vector<16x32xf32>
    %14 = arith.mulf %13, %13 : vector<16x32xf32>
    %cst_9 = arith.constant dense<0.000000e+00> : vector<16xf32>
    %15 = vector.multi_reduction <add>, %14, %cst_9 [1] : vector<16x32xf32> to vector<16xf32>
    %16 = vector.shape_cast %15 : vector<16xf32> to vector<16x1xf32>
    %cst_10 = arith.constant 3.200000e+01 : f32
    %17 = vector.broadcast %cst_10 : f32 to vector<16x1xf32>
    %18 = arith.divf %16, %17 : vector<16x1xf32>
    %cst_11 = arith.constant 9.99999974E-6 : f32
    %19 = vector.broadcast %cst_11 : f32 to vector<16x1xf32>
    %20 = arith.addf %18, %19 : vector<16x1xf32>
    %21 = math.rsqrt %20 : vector<16x1xf32>
    %22 = vector.broadcast %21 : vector<16x1xf32> to vector<16x32xf32>
    %23 = arith.mulf %13, %22 : vector<16x32xf32>
    %24 = vector.broadcast %5 : vector<1x32xf32> to vector<16x32xf32>
    %25 = arith.mulf %23, %24 : vector<16x32xf32>
    %26 = vector.broadcast %7 : vector<1x32xf32> to vector<16x32xf32>
    %27 = arith.addf %25, %26 : vector<16x32xf32>
    %c0_12 = arith.constant 0 : index
    %c0_13 = arith.constant 0 : index
    %c0_14 = arith.constant 0 : index
    %28 = vector.load %arg5[%c0_12, %c0_13, %c0_14] : memref<1x32x96xbf16, #tpu.memory_space<vmem>>, vector<1x32x96xbf16>
    %29 = vector.shape_cast %28 : vector<1x32x96xbf16> to vector<32x96xbf16>
    %30 = arith.truncf %27 : vector<16x32xf32> to vector<16x32xbf16>
    %cst_15 = arith.constant dense<0.000000e+00> : vector<16x96xf32>
    %31 = tpu.matmul %30, %29, %cst_15 {dimension_numbers = #tpu.dot_dimension_numbers<[1], [0], [0], [1], [0, 0, 1, 1], [], []>} : vector<16x32xbf16>, vector<32x96xbf16>, vector<16x96xf32> -> vector<16x96xf32>
    %32 = arith.truncf %31 : vector<16x96xf32> to vector<16x96xbf16>
    %33 = vector.shape_cast %32 : vector<16x96xbf16> to vector<1x16x96xbf16>
    %34 = tpu.iota {dimensions = array<i32: 2>} : vector<1x1x16xi32>
    %c5_i32 = arith.constant 5 : i32
    %35 = vector.broadcast %c5_i32 : i32 to vector<1x1x16xi32>
    %36 = arith.cmpi slt, %34, %35 : vector<1x1x16xi32>
    %cst_16 = arith.constant 0.000000e+00 : f32
    %cst_17 = arith.constant -1.000000e+30 : f32
    %37 = vector.broadcast %cst_16 : f32 to vector<1x1x16xf32>
    %38 = vector.broadcast %cst_17 : f32 to vector<1x1x16xf32>
    %39 = arith.select %36, %37, %38 : vector<1x1x16xi1>, vector<1x1x16xf32>
    %40 = vector.extract_strided_slice %33 {offsets = [0, 0, 0], sizes = [1, 16, 16], strides = [1, 1, 1]} : vector<1x16x96xbf16> to vector<1x16x16xbf16>
    %41 = vector.extract_strided_slice %33 {offsets = [0, 0, 32], sizes = [1, 16, 16], strides = [1, 1, 1]} : vector<1x16x96xbf16> to vector<1x16x16xbf16>
    %42 = vector.extract_strided_slice %33 {offsets = [0, 0, 64], sizes = [1, 16, 16], strides = [1, 1, 1]} : vector<1x16x96xbf16> to vector<1x16x16xbf16>
    "tpu.trace_start"() <{level = 10 : i32, message = "bqd,bkd->bqk"}> : () -> ()
    %cst_18 = arith.constant dense<0.000000e+00> : vector<1x16x16xf32>
    %43 = tpu.matmul %40, %41, %cst_18 {dimension_numbers = #tpu.dot_dimension_numbers<[2], [2], [1], [1], [0, 0, 0, 1, 1, 1], [0], [0]>} : vector<1x16x16xbf16>, vector<1x16x16xbf16>, vector<1x16x16xf32> -> vector<1x16x16xf32>
    "tpu.trace_stop"() : () -> ()
    %cst_19 = arith.constant 2.500000e-01 : f32
    %44 = vector.broadcast %cst_19 : f32 to vector<1x16x16xf32>
    %45 = arith.mulf %43, %44 : vector<1x16x16xf32>
    %46 = vector.broadcast %39 : vector<1x1x16xf32> to vector<1x16x16xf32>
    %47 = arith.addf %45, %46 : vector<1x16x16xf32>
    %cst_20 = arith.constant dense<0xFF800000> : vector<1x16xf32>
    %48 = vector.multi_reduction <maximumf>, %47, %cst_20 [2] : vector<1x16x16xf32> to vector<1x16xf32>
    %49 = vector.shape_cast %48 : vector<1x16xf32> to vector<1x16x1xf32>
    %50 = vector.broadcast %49 : vector<1x16x1xf32> to vector<1x16x16xf32>
    %51 = arith.subf %47, %50 : vector<1x16x16xf32>
    %52 = math.exp %51 : vector<1x16x16xf32>
    %cst_21 = arith.constant dense<0.000000e+00> : vector<1x16xf32>
    %53 = vector.multi_reduction <add>, %52, %cst_21 [2] : vector<1x16x16xf32> to vector<1x16xf32>
    %54 = vector.shape_cast %53 : vector<1x16xf32> to vector<1x16x1xf32>
    %55 = tpu.reciprocal %54 {approx = true} : vector<1x16x1xf32> -> vector<1x16x1xf32>
    %56 = vector.broadcast %55 : vector<1x16x1xf32> to vector<1x16x16xf32>
    %57 = arith.mulf %52, %56 : vector<1x16x16xf32>
    %58 = arith.truncf %57 : vector<1x16x16xf32> to vector<1x16x16xbf16>
    "tpu.trace_start"() <{level = 10 : i32, message = "bqk,bkd->bqd"}> : () -> ()
    %cst_22 = arith.constant dense<0.000000e+00> : vector<1x16x16xf32>
    %59 = tpu.matmul %58, %42, %cst_22 {dimension_numbers = #tpu.dot_dimension_numbers<[2], [1], [1], [2], [0, 0, 0, 1, 1, 2], [0], [0]>} : vector<1x16x16xbf16>, vector<1x16x16xbf16>, vector<1x16x16xf32> -> vector<1x16x16xf32>
    "tpu.trace_stop"() : () -> ()
    %60 = vector.extract_strided_slice %33 {offsets = [0, 0, 16], sizes = [1, 16, 16], strides = [1, 1, 1]} : vector<1x16x96xbf16> to vector<1x16x16xbf16>
    %61 = vector.extract_strided_slice %33 {offsets = [0, 0, 48], sizes = [1, 16, 16], strides = [1, 1, 1]} : vector<1x16x96xbf16> to vector<1x16x16xbf16>
    %62 = vector.extract_strided_slice %33 {offsets = [0, 0, 80], sizes = [1, 16, 16], strides = [1, 1, 1]} : vector<1x16x96xbf16> to vector<1x16x16xbf16>
    "tpu.trace_start"() <{level = 10 : i32, message = "bqd,bkd->bqk"}> : () -> ()
    %cst_23 = arith.constant dense<0.000000e+00> : vector<1x16x16xf32>
    %63 = tpu.matmul %60, %61, %cst_23 {dimension_numbers = #tpu.dot_dimension_numbers<[2], [2], [1], [1], [0, 0, 0, 1, 1, 1], [0], [0]>} : vector<1x16x16xbf16>, vector<1x16x16xbf16>, vector<1x16x16xf32> -> vector<1x16x16xf32>
    "tpu.trace_stop"() : () -> ()
    %cst_24 = arith.constant 2.500000e-01 : f32
    %64 = vector.broadcast %cst_24 : f32 to vector<1x16x16xf32>
    %65 = arith.mulf %63, %64 : vector<1x16x16xf32>
    %66 = vector.broadcast %39 : vector<1x1x16xf32> to vector<1x16x16xf32>
    %67 = arith.addf %65, %66 : vector<1x16x16xf32>
    %cst_25 = arith.constant dense<0xFF800000> : vector<1x16xf32>
    %68 = vector.multi_reduction <maximumf>, %67, %cst_25 [2] : vector<1x16x16xf32> to vector<1x16xf32>
    %69 = vector.shape_cast %68 : vector<1x16xf32> to vector<1x16x1xf32>
    %70 = vector.broadcast %69 : vector<1x16x1xf32> to vector<1x16x16xf32>
    %71 = arith.subf %67, %70 : vector<1x16x16xf32>
    %72 = math.exp %71 : vector<1x16x16xf32>
    %cst_26 = arith.constant dense<0.000000e+00> : vector<1x16xf32>
    %73 = vector.multi_reduction <add>, %72, %cst_26 [2] : vector<1x16x16xf32> to vector<1x16xf32>
    %74 = vector.shape_cast %73 : vector<1x16xf32> to vector<1x16x1xf32>
    %75 = tpu.reciprocal %74 {approx = true} : vector<1x16x1xf32> -> vector<1x16x1xf32>
    %76 = vector.broadcast %75 : vector<1x16x1xf32> to vector<1x16x16xf32>
    %77 = arith.mulf %72, %76 : vector<1x16x16xf32>
    %78 = arith.truncf %77 : vector<1x16x16xf32> to vector<1x16x16xbf16>
    "tpu.trace_start"() <{level = 10 : i32, message = "bqk,bkd->bqd"}> : () -> ()
    %cst_27 = arith.constant dense<0.000000e+00> : vector<1x16x16xf32>
    %79 = tpu.matmul %78, %62, %cst_27 {dimension_numbers = #tpu.dot_dimension_numbers<[2], [1], [1], [2], [0, 0, 0, 1, 1, 2], [0], [0]>} : vector<1x16x16xbf16>, vector<1x16x16xbf16>, vector<1x16x16xf32> -> vector<1x16x16xf32>
    "tpu.trace_stop"() : () -> ()
    %80 = tpu.concatenate %59, %79 in 2 : vector<1x16x16xf32>, vector<1x16x16xf32> -> vector<1x16x32xf32>
    %81 = vector.shape_cast %80 : vector<1x16x32xf32> to vector<16x32xf32>
    %c0_28 = arith.constant 0 : index
    %c0_29 = arith.constant 0 : index
    %c0_30 = arith.constant 0 : index
    %82 = vector.load %arg6[%c0_28, %c0_29, %c0_30] : memref<1x32x32xbf16, #tpu.memory_space<vmem>>, vector<1x32x32xbf16>
    %83 = vector.shape_cast %82 : vector<1x32x32xbf16> to vector<32x32xbf16>
    %84 = arith.truncf %81 : vector<16x32xf32> to vector<16x32xbf16>
    %cst_31 = arith.constant dense<0.000000e+00> : vector<16x32xf32>
    %85 = tpu.matmul %84, %83, %cst_31 {dimension_numbers = #tpu.dot_dimension_numbers<[1], [0], [0], [1], [0, 0, 1, 1], [], []>} : vector<16x32xbf16>, vector<32x32xbf16>, vector<16x32xf32> -> vector<16x32xf32>
    %86 = arith.addf %3, %85 : vector<16x32xf32>
    %c0_32 = arith.constant 0 : index
    %c0_33 = arith.constant 0 : index
    %c0_34 = arith.constant 0 : index
    %87 = vector.load %arg7[%c0_32, %c0_33, %c0_34] : memref<1x1x32xf32, #tpu.memory_space<vmem>>, vector<1x1x32xf32>
    %88 = vector.shape_cast %87 : vector<1x1x32xf32> to vector<1x32xf32>
    %89 = vector.broadcast %88 : vector<1x32xf32> to vector<16x32xf32>
    %90 = arith.addf %86, %89 : vector<16x32xf32>
    %c0_35 = arith.constant 0 : index
    %c0_36 = arith.constant 0 : index
    %c0_37 = arith.constant 0 : index
    %91 = vector.load %arg8[%c0_35, %c0_36, %c0_37] : memref<1x1x32xf32, #tpu.memory_space<vmem>>, vector<1x1x32xf32>
    %92 = vector.shape_cast %91 : vector<1x1x32xf32> to vector<1x32xf32>
    %c0_38 = arith.constant 0 : index
    %c0_39 = arith.constant 0 : index
    %c0_40 = arith.constant 0 : index
    %93 = vector.load %arg9[%c0_38, %c0_39, %c0_40] : memref<1x1x32xf32, #tpu.memory_space<vmem>>, vector<1x1x32xf32>
    %94 = vector.shape_cast %93 : vector<1x1x32xf32> to vector<1x32xf32>
    %cst_41 = arith.constant dense<0.000000e+00> : vector<16xf32>
    %95 = vector.multi_reduction <add>, %90, %cst_41 [1] : vector<16x32xf32> to vector<16xf32>
    %96 = vector.shape_cast %95 : vector<16xf32> to vector<16x1xf32>
    %cst_42 = arith.constant 3.200000e+01 : f32
    %97 = vector.broadcast %cst_42 : f32 to vector<16x1xf32>
    %98 = arith.divf %96, %97 : vector<16x1xf32>
    %99 = vector.broadcast %98 : vector<16x1xf32> to vector<16x32xf32>
    %100 = arith.subf %90, %99 : vector<16x32xf32>
    %101 = arith.mulf %100, %100 : vector<16x32xf32>
    %cst_43 = arith.constant dense<0.000000e+00> : vector<16xf32>
    %102 = vector.multi_reduction <add>, %101, %cst_43 [1] : vector<16x32xf32> to vector<16xf32>
    %103 = vector.shape_cast %102 : vector<16xf32> to vector<16x1xf32>
    %cst_44 = arith.constant 3.200000e+01 : f32
    %104 = vector.broadcast %cst_44 : f32 to vector<16x1xf32>
    %105 = arith.divf %103, %104 : vector<16x1xf32>
    %cst_45 = arith.constant 9.99999974E-6 : f32
    %106 = vector.broadcast %cst_45 : f32 to vector<16x1xf32>
    %107 = arith.addf %105, %106 : vector<16x1xf32>
    %108 = math.rsqrt %107 : vector<16x1xf32>
    %109 = vector.broadcast %108 : vector<16x1xf32> to vector<16x32xf32>
    %110 = arith.mulf %100, %109 : vector<16x32xf32>
    %111 = vector.broadcast %92 : vector<1x32xf32> to vector<16x32xf32>
    %112 = arith.mulf %110, %111 : vector<16x32xf32>
    %113 = vector.broadcast %94 : vector<1x32xf32> to vector<16x32xf32>
    %114 = arith.addf %112, %113 : vector<16x32xf32>
    %c0_46 = arith.constant 0 : index
    %c0_47 = arith.constant 0 : index
    %c0_48 = arith.constant 0 : index
    %115 = vector.load %arg10[%c0_46, %c0_47, %c0_48] : memref<1x32x64xbf16, #tpu.memory_space<vmem>>, vector<1x32x64xbf16>
    %116 = vector.shape_cast %115 : vector<1x32x64xbf16> to vector<32x64xbf16>
    %117 = arith.truncf %114 : vector<16x32xf32> to vector<16x32xbf16>
    %cst_49 = arith.constant dense<0.000000e+00> : vector<16x64xf32>
    %118 = tpu.matmul %117, %116, %cst_49 {dimension_numbers = #tpu.dot_dimension_numbers<[1], [0], [0], [1], [0, 0, 1, 1], [], []>} : vector<16x32xbf16>, vector<32x64xbf16>, vector<16x64xf32> -> vector<16x64xf32>
    %c0_50 = arith.constant 0 : index
    %c0_51 = arith.constant 0 : index
    %c0_52 = arith.constant 0 : index
    %119 = vector.load %arg11[%c0_50, %c0_51, %c0_52] : memref<1x1x64xf32, #tpu.memory_space<vmem>>, vector<1x1x64xf32>
    %120 = vector.shape_cast %119 : vector<1x1x64xf32> to vector<1x64xf32>
    %121 = vector.broadcast %120 : vector<1x64xf32> to vector<16x64xf32>
    %122 = arith.addf %118, %121 : vector<16x64xf32>
    %cst_53 = arith.constant 5.000000e-01 : f32
    %123 = vector.broadcast %cst_53 : f32 to vector<16x64xf32>
    %124 = arith.mulf %123, %122 : vector<16x64xf32>
    %cst_54 = arith.constant 0.707106769 : f32
    %125 = vector.broadcast %cst_54 : f32 to vector<16x64xf32>
    %126 = arith.mulf %122, %125 : vector<16x64xf32>
    %127 = math.erf %126 : vector<16x64xf32>
    %cst_55 = arith.constant 1.000000e+00 : f32
    %128 = vector.broadcast %cst_55 : f32 to vector<16x64xf32>
    %129 = arith.addf %128, %127 : vector<16x64xf32>
    %130 = arith.mulf %124, %129 : vector<16x64xf32>
    %c0_56 = arith.constant 0 : index
    %c0_57 = arith.constant 0 : index
    %c0_58 = arith.constant 0 : index
    %131 = vector.load %arg12[%c0_56, %c0_57, %c0_58] : memref<1x64x32xbf16, #tpu.memory_space<vmem>>, vector<1x64x32xbf16>
    %132 = vector.shape_cast %131 : vector<1x64x32xbf16> to vector<64x32xbf16>
    %133 = arith.truncf %130 : vector<16x64xf32> to vector<16x64xbf16>
    %cst_59 = arith.constant dense<0.000000e+00> : vector<16x32xf32>
    %134 = tpu.matmul %133, %132, %cst_59 {dimension_numbers = #tpu.dot_dimension_numbers<[1], [0], [0], [1], [0, 0, 1, 1], [], []>} : vector<16x64xbf16>, vector<64x32xbf16>, vector<16x32xf32> -> vector<16x32xf32>
    %135 = arith.addf %90, %134 : vector<16x32xf32>
    %c0_60 = arith.constant 0 : index
    %c0_61 = arith.constant 0 : index
    %c0_62 = arith.constant 0 : index
    %136 = vector.load %arg13[%c0_60, %c0_61, %c0_62] : memref<1x1x32xf32, #tpu.memory_space<vmem>>, vector<1x1x32xf32>
    %137 = vector.shape_cast %136 : vector<1x1x32xf32> to vector<1x32xf32>
    %138 = vector.broadcast %137 : vector<1x32xf32> to vector<16x32xf32>
    %139 = arith.addf %135, %138 : vector<16x32xf32>
    %c0_63 = arith.constant 0 : index
    %c0_64 = arith.constant 0 : index
    %140 = vector.load %arg15[%c0_63, %c0_64] : memref<16x32xf32, #tpu.memory_space<vmem>>, vector<16x32xf32>
    tpu.vector_store %arg15[%c0_63, %c0_64], %139 {strides = array<i32>} : memref<16x32xf32, #tpu.memory_space<vmem>>, vector<16x32xf32>,
    %c1_i32 = arith.constant 1 : i32
    %141 = arith.cmpi eq, %arg1, %c1_i32 : i32
    %142 = arith.extui %141 : i1 to i32
    %c0_i32_65 = arith.constant 0 : i32
    %143 = arith.cmpi ne, %142, %c0_i32_65 : i32
    scf.if %143 {
      %c0_66 = arith.constant 0 : index
      %c0_67 = arith.constant 0 : index
      %144 = vector.load %arg14[%c0_66, %c0_67] : memref<16x32xf32, #tpu.memory_space<vmem>>, vector<16x32xf32>
      tpu.vector_store %arg14[%c0_66, %c0_67], %139 {strides = array<i32>} : memref<16x32xf32, #tpu.memory_space<vmem>>, vector<16x32xf32>,
    } else {
    }
    return
  }
  func.func @transform_0(%arg0: i32, %arg1: i32) -> (i32, i32) {
    %c0_i32 = arith.constant 0 : i32
    %c0_i32_0 = arith.constant 0 : i32
    return %arg0, %c0_i32 : i32, i32
  }
  func.func @transform_1(%arg0: i32, %arg1: i32) -> (i32, i32, i32) {
    %c0_i32 = arith.constant 0 : i32
    %c0_i32_0 = arith.constant 0 : i32
    %c0_i32_1 = arith.constant 0 : i32
    return %arg1, %c0_i32, %c0_i32_0 : i32, i32, i32
  }
  func.func @transform_2(%arg0: i32, %arg1: i32) -> (i32, i32, i32) {
    %c0_i32 = arith.constant 0 : i32
    %c0_i32_0 = arith.constant 0 : i32
    %c0_i32_1 = arith.constant 0 : i32
    return %arg1, %c0_i32, %c0_i32_0 : i32, i32, i32
  }
  func.func @transform_3(%arg0: i32, %arg1: i32) -> (i32, i32, i32) {
    %c0_i32 = arith.constant 0 : i32
    %c0_i32_0 = arith.constant 0 : i32
    %c0_i32_1 = arith.constant 0 : i32
    return %arg1, %c0_i32, %c0_i32_0 : i32, i32, i32
  }
  func.func @transform_4(%arg0: i32, %arg1: i32) -> (i32, i32, i32) {
    %c0_i32 = arith.constant 0 : i32
    %c0_i32_0 = arith.constant 0 : i32
    %c0_i32_1 = arith.constant 0 : i32
    return %arg1, %c0_i32, %c0_i32_0 : i32, i32, i32
  }
  func.func @transform_5(%arg0: i32, %arg1: i32) -> (i32, i32, i32) {
    %c0_i32 = arith.constant 0 : i32
    %c0_i32_0 = arith.constant 0 : i32
    %c0_i32_1 = arith.constant 0 : i32
    return %arg1, %c0_i32, %c0_i32_0 : i32, i32, i32
  }
  func.func @transform_6(%arg0: i32, %arg1: i32) -> (i32, i32, i32) {
    %c0_i32 = arith.constant 0 : i32
    %c0_i32_0 = arith.constant 0 : i32
    %c0_i32_1 = arith.constant 0 : i32
    return %arg1, %c0_i32, %c0_i32_0 : i32, i32, i32
  }
  func.func @transform_7(%arg0: i32, %arg1: i32) -> (i32, i32, i32) {
    %c0_i32 = arith.constant 0 : i32
    %c0_i32_0 = arith.constant 0 : i32
    %c0_i32_1 = arith.constant 0 : i32
    return %arg1, %c0_i32, %c0_i32_0 : i32, i32, i32
  }
  func.func @transform_8(%arg0: i32, %arg1: i32) -> (i32, i32, i32) {
    %c0_i32 = arith.constant 0 : i32
    %c0_i32_0 = arith.constant 0 : i32
    %c0_i32_1 = arith.constant 0 : i32
    return %arg1, %c0_i32, %c0_i32_0 : i32, i32, i32
  }
  func.func @transform_9(%arg0: i32, %arg1: i32) -> (i32, i32, i32) {
    %c0_i32 = arith.constant 0 : i32
    %c0_i32_0 = arith.constant 0 : i32
    %c0_i32_1 = arith.constant 0 : i32
    return %arg1, %c0_i32, %c0_i32_0 : i32, i32, i32
  }
  func.func @transform_10(%arg0: i32, %arg1: i32) -> (i32, i32, i32) {
    %c0_i32 = arith.constant 0 : i32
    %c0_i32_0 = arith.constant 0 : i32
    %c0_i32_1 = arith.constant 0 : i32
    return %arg1, %c0_i32, %c0_i32_0 : i32, i32, i32
  }
  func.func @transform_11(%arg0: i32, %arg1: i32) -> (i32, i32, i32) {
    %c0_i32 = arith.constant 0 : i32
    %c0_i32_0 = arith.constant 0 : i32
    %c0_i32_1 = arith.constant 0 : i32
    return %arg1, %c0_i32, %c0_i32_0 : i32, i32, i32
  }
  func.func @transform_12(%arg0: i32, %arg1: i32) -> (i32, i32) {
    %c0_i32 = arith.constant 0 : i32
    %c0_i32_0 = arith.constant 0 : i32
    return %arg0, %c0_i32 : i32, i32
  }
}

</mosaic_0001>

<llo_original>
// kernel: vit_forward_pallas.1
$region0: #{vit_forward_pallas.1}
  #allocation0 [shape = 'u32[]', space=smem, size = 0x4, offset = 0x4, fixed_abs, tag = 'smem constant byte address 0x4 - core index']
  #allocation1 [shape = 'u32[144,128]{1,0:T(1,128)}', space=vmem, size = 0x12000, scoped, tag = 'internal scratch']
  #allocation2 [shape = 'f32[16,32]{1,0:T(8,128)}', space=vmem, size = 0x2000, scoped, tag = 'scratch operand']
  %s0 = inlined_call_operand.vmem [shape: f32[32,32], index: 0, kind: input, shape index: {}]
  %s1 = inlined_call_operand.vmem [shape: f32[2,1,32], index: 1, kind: input, shape index: {}]
  %s2 = inlined_call_operand.vmem [shape: f32[2,1,32], index: 2, kind: input, shape index: {}]
  %s3 = inlined_call_operand.vmem [shape: bf16[2,32,96], index: 3, kind: input, shape index: {}]
  %s4 = inlined_call_operand.vmem [shape: bf16[2,32,32], index: 4, kind: input, shape index: {}]
  %s5 = inlined_call_operand.vmem [shape: f32[2,1,32], index: 5, kind: input, shape index: {}]
  %s6 = inlined_call_operand.vmem [shape: f32[2,1,32], index: 6, kind: input, shape index: {}]
  %s7 = inlined_call_operand.vmem [shape: f32[2,1,32], index: 7, kind: input, shape index: {}]
  %s8 = inlined_call_operand.vmem [shape: bf16[2,32,64], index: 8, kind: input, shape index: {}]
  %s9 = inlined_call_operand.vmem [shape: f32[2,1,64], index: 9, kind: input, shape index: {}]
  %s10 = inlined_call_operand.vmem [shape: bf16[2,64,32], index: 10, kind: input, shape index: {}]
  %s11 = inlined_call_operand.vmem [shape: f32[2,1,32], index: 11, kind: input, shape index: {}]
  %s12 = inlined_call_operand.vmem [shape: f32[32,32], index: 12, kind: output, shape index: {}]
  %s13 = sld [smem:[#allocation0]]
  $region89: #{vit_forward_pallas.1} parent=0
    _
  %s15 = ssub.s32 1, %s13
  %s16 = scalar_select 0, %s15, %s13
  loop: start=0, step=1, limit=6
  $region2: #{vit_forward_pallas.1} parent=0 // loop_pre_header
    _
  $region3: #{vit_forward_pallas.1} parent=0 // loop_header
    %s18 = sphi 0, %s22
    %p19 = scmp.ge.s32.totalorder %s18, 6
    %s25 = sphi 0, %s37
    %s26 = sphi 0, %s33
    %s27 = sphi 0, %s25
    %s28 = sphi 0, %s26
    %s29 = sphi 0, %s27
    %s30 = sphi 0, %s28
    %s40 = sphi 0, %s42
    %s43 = sphi 0, %s40
    %s44 = sphi 0, %s43
    %s60 = sphi 0, %s44
    %s66 = sphi 0, %s68
    %s69 = sphi 0, %s66
    %s70 = sphi 0, %s69
    %s86 = sphi 0, %s70
    %s92 = sphi 0, %s94
    %s95 = sphi 0, %s92
    %s96 = sphi 0, %s95
    %s112 = sphi 0, %s96
    %s118 = sphi 0, %s120
    %s121 = sphi 0, %s118
    %s122 = sphi 0, %s121
    %s138 = sphi 0, %s122
    %s144 = sphi 0, %s146
    %s147 = sphi 0, %s144
    %s148 = sphi 0, %s147
    %s164 = sphi 0, %s148
    %s170 = sphi 0, %s172
    %s173 = sphi 0, %s170
    %s174 = sphi 0, %s173
    %s190 = sphi 0, %s174
    %s196 = sphi 0, %s198
    %s199 = sphi 0, %s196
    %s200 = sphi 0, %s199
    %s216 = sphi 0, %s200
    %s222 = sphi 0, %s224
    %s225 = sphi 0, %s222
    %s226 = sphi 0, %s225
    %s242 = sphi 0, %s226
    %s248 = sphi 0, %s250
    %s251 = sphi 0, %s248
    %s252 = sphi 0, %s251
    %s268 = sphi 0, %s252
    %s274 = sphi 0, %s276
    %s277 = sphi 0, %s274
    %s278 = sphi 0, %s277
    %s294 = sphi 0, %s278
    %s300 = sphi 0, %s302
    %s303 = sphi 0, %s300
    %s304 = sphi 0, %s303
    %s320 = sphi 0, %s304
    %s326 = sphi 0, %s328
    %s329 = sphi 0, %s326
    %s330 = sphi 0, %s329
    %s346 = sphi 0, %s330
    %s352 = sphi 0, %s354
    %s355 = sphi 0, %s352
    %s356 = sphi 0, %s355
    %s372 = sphi 0, %s356
  $region4: #{vit_forward_pallas.1} parent=0 // loop_header_branch
    %21 = sbr.rel (%p19) target = $region8
  $region5: #{vit_forward_pallas.1} parent=0 // loop_body
    %s23 = ssub.s32 %s18, 1
    %s24 = ssub.s32 %s18, 2
    %s31 = sadd.s32 1, %s26
    %p32 = scmp.ge.s32.totalorder %s31, 2
    %s33 = scalar_select %p32, 0, %s31
    %s34 = sadd.s32 1, %s25
    %s35 = scalar_select %p32, %s34, %s25
    %p36 = scmp.ge.s32.totalorder %s35, 2
    %s37 = scalar_select %p36, 0, %s35
    %s38 = ssub.s32 %s25, %s37
    %p39 = scmp.eq.s32.totalorder %s38, 0
    %s41 = sadd.s32 %s40, 1
    %s42 = scalar_select %p39, %s40, %s41
    %p45 = pneg %p39
    %p46 = scmp.eq.s32.totalorder %s18, 3
    %p47 = por %p45, %p46
    %p48 = scmp.ne.s32.totalorder %s40, %s43
    %p49 = scmp.eq.s32.totalorder %s18, 0
    %p50 = por %p48, %p49
    %p51 = scmp.ne.s32.totalorder %s40, %s43
    %p52 = scmp.eq.s32.totalorder %s23, 3
    %p53 = por %p51, %p52
    %p54 = scmp.ne.s32.totalorder %s43, %s44
    %p55 = scmp.eq.s32.totalorder %s23, 0
    %p56 = por %p54, %p55
    %p57 = scmp.ne.s32.totalorder %s43, %s44
    %p58 = scmp.eq.s32.totalorder %s24, 3
    %p59 = por %p57, %p58
    %p61 = scmp.ne.s32.totalorder %s44, %s60
    %p62 = scmp.eq.s32.totalorder %s24, 0
    %p63 = por %p61, %p62
    %s64 = ssub.s32 %s26, %s33
    %p65 = scmp.eq.s32.totalorder %s64, 0
    %s67 = sadd.s32 %s66, 1
    %s68 = scalar_select %p65, %s66, %s67
    %p71 = pneg %p65
    %p72 = scmp.eq.s32.totalorder %s18, 3
    %p73 = por %p71, %p72
    %p74 = scmp.ne.s32.totalorder %s66, %s69
    %p75 = scmp.eq.s32.totalorder %s18, 0
    %p76 = por %p74, %p75
    %p77 = scmp.ne.s32.totalorder %s66, %s69
    %p78 = scmp.eq.s32.totalorder %s23, 3
    %p79 = por %p77, %p78
    %p80 = scmp.ne.s32.totalorder %s69, %s70
    %p81 = scmp.eq.s32.totalorder %s23, 0
    %p82 = por %p80, %p81
    %p83 = scmp.ne.s32.totalorder %s69, %s70
    %p84 = scmp.eq.s32.totalorder %s24, 3
    %p85 = por %p83, %p84
    %p87 = scmp.ne.s32.totalorder %s70, %s86
    %p88 = scmp.eq.s32.totalorder %s24, 0
    %p89 = por %p87, %p88
    %s90 = ssub.s32 %s26, %s33
    %p91 = scmp.eq.s32.totalorder %s90, 0
    %s93 = sadd.s32 %s92, 1
    %s94 = scalar_select %p91, %s92, %s93
    %p97 = pneg %p91
    %p98 = scmp.eq.s32.totalorder %s18, 3
    %p99 = por %p97, %p98
    %p100 = scmp.ne.s32.totalorder %s92, %s95
    %p101 = scmp.eq.s32.totalorder %s18, 0
    %p102 = por %p100, %p101
    %p103 = scmp.ne.s32.totalorder %s92, %s95
    %p104 = scmp.eq.s32.totalorder %s23, 3
    %p105 = por %p103, %p104
    %p106 = scmp.ne.s32.totalorder %s95, %s96
    %p107 = scmp.eq.s32.totalorder %s23, 0
    %p108 = por %p106, %p107
    %p109 = scmp.ne.s32.totalorder %s95, %s96
    %p110 = scmp.eq.s32.totalorder %s24, 3
    %p111 = por %p109, %p110
    %p113 = scmp.ne.s32.totalorder %s96, %s112
    %p114 = scmp.eq.s32.totalorder %s24, 0
    %p115 = por %p113, %p114
    %s116 = ssub.s32 %s26, %s33
    %p117 = scmp.eq.s32.totalorder %s116, 0
    %s119 = sadd.s32 %s118, 1
    %s120 = scalar_select %p117, %s118, %s119
    %p123 = pneg %p117
    %p124 = scmp.eq.s32.totalorder %s18, 3
    %p125 = por %p123, %p124
    %p126 = scmp.ne.s32.totalorder %s118, %s121
    %p127 = scmp.eq.s32.totalorder %s18, 0
    %p128 = por %p126, %p127
    %p129 = scmp.ne.s32.totalorder %s118, %s121
    %p130 = scmp.eq.s32.totalorder %s23, 3
    %p131 = por %p129, %p130
    %p132 = scmp.ne.s32.totalorder %s121, %s122
    %p133 = scmp.eq.s32.totalorder %s23, 0
    %p134 = por %p132, %p133
    %p135 = scmp.ne.s32.totalorder %s121, %s122
    %p136 = scmp.eq.s32.totalorder %s24, 3
    %p137 = por %p135, %p136
    %p139 = scmp.ne.s32.totalorder %s122, %s138
    %p140 = scmp.eq.s32.totalorder %s24, 0
    %p141 = por %p139, %p140
    %s142 = ssub.s32 %s26, %s33
    %p143 = scmp.eq.s32.totalorder %s142, 0
    %s145 = sadd.s32 %s144, 1
    %s146 = scalar_select %p143, %s144, %s145
    %p149 = pneg %p143
    %p150 = scmp.eq.s32.totalorder %s18, 3
    %p151 = por %p149, %p150
    %p152 = scmp.ne.s32.totalorder %s144, %s147
    %p153 = scmp.eq.s32.totalorder %s18, 0
    %p154 = por %p152, %p153
    %p155 = scmp.ne.s32.totalorder %s144, %s147
    %p156 = scmp.eq.s32.totalorder %s23, 3
    %p157 = por %p155, %p156
    %p158 = scmp.ne.s32.totalorder %s147, %s148
    %p159 = scmp.eq.s32.totalorder %s23, 0
    %p160 = por %p158, %p159
    %p161 = scmp.ne.s32.totalorder %s147, %s148
    %p162 = scmp.eq.s32.totalorder %s24, 3
    %p163 = por %p161, %p162
    %p165 = scmp.ne.s32.totalorder %s148, %s164
    %p166 = scmp.eq.s32.totalorder %s24, 0
    %p167 = por %p165, %p166
    %s168 = ssub.s32 %s26, %s33
    %p169 = scmp.eq.s32.totalorder %s168, 0
    %s171 = sadd.s32 %s170, 1
    %s172 = scalar_select %p169, %s170, %s171
    %p175 = pneg %p169
    %p176 = scmp.eq.s32.totalorder %s18, 3
    %p177 = por %p175, %p176
    %p178 = scmp.ne.s32.totalorder %s170, %s173
    %p179 = scmp.eq.s32.totalorder %s18, 0
    %p180 = por %p178, %p179
    %p181 = scmp.ne.s32.totalorder %s170, %s173
    %p182 = scmp.eq.s32.totalorder %s23, 3
    %p183 = por %p181, %p182
    %p184 = scmp.ne.s32.totalorder %s173, %s174
    %p185 = scmp.eq.s32.totalorder %s23, 0
    %p186 = por %p184, %p185
    %p187 = scmp.ne.s32.totalorder %s173, %s174
    %p188 = scmp.eq.s32.totalorder %s24, 3
    %p189 = por %p187, %p188
    %p191 = scmp.ne.s32.totalorder %s174, %s190
    %p192 = scmp.eq.s32.totalorder %s24, 0
    %p193 = por %p191, %p192
    %s194 = ssub.s32 %s26, %s33
    %p195 = scmp.eq.s32.totalorder %s194, 0
    %s197 = sadd.s32 %s196, 1
    %s198 = scalar_select %p195, %s196, %s197
    %p201 = pneg %p195
    %p202 = scmp.eq.s32.totalorder %s18, 3
    %p203 = por %p201, %p202
    %p204 = scmp.ne.s32.totalorder %s196, %s199
    %p205 = scmp.eq.s32.totalorder %s18, 0
    %p206 = por %p204, %p205
    %p207 = scmp.ne.s32.totalorder %s196, %s199
    %p208 = scmp.eq.s32.totalorder %s23, 3
    %p209 = por %p207, %p208
    %p210 = scmp.ne.s32.totalorder %s199, %s200
    %p211 = scmp.eq.s32.totalorder %s23, 0
    %p212 = por %p210, %p211
    %p213 = scmp.ne.s32.totalorder %s199, %s200
    %p214 = scmp.eq.s32.totalorder %s24, 3
    %p215 = por %p213, %p214
    %p217 = scmp.ne.s32.totalorder %s200, %s216
    %p218 = scmp.eq.s32.totalorder %s24, 0
    %p219 = por %p217, %p218
    %s220 = ssub.s32 %s26, %s33
    %p221 = scmp.eq.s32.totalorder %s220, 0
    %s223 = sadd.s32 %s222, 1
    %s224 = scalar_select %p221, %s222, %s223
    %p227 = pneg %p221
    %p228 = scmp.eq.s32.totalorder %s18, 3
    %p229 = por %p227, %p228
    %p230 = scmp.ne.s32.totalorder %s222, %s225
    %p231 = scmp.eq.s32.totalorder %s18, 0
    %p232 = por %p230, %p231
    %p233 = scmp.ne.s32.totalorder %s222, %s225
    %p234 = scmp.eq.s32.totalorder %s23, 3
    %p235 = por %p233, %p234
    %p236 = scmp.ne.s32.totalorder %s225, %s226
    %p237 = scmp.eq.s32.totalorder %s23, 0
    %p238 = por %p236, %p237
    %p239 = scmp.ne.s32.totalorder %s225, %s226
    %p240 = scmp.eq.s32.totalorder %s24, 3
    %p241 = por %p239, %p240
    %p243 = scmp.ne.s32.totalorder %s226, %s242
    %p244 = scmp.eq.s32.totalorder %s24, 0
    %p245 = por %p243, %p244
    %s246 = ssub.s32 %s26, %s33
    %p247 = scmp.eq.s32.totalorder %s246, 0
    %s249 = sadd.s32 %s248, 1
    %s250 = scalar_select %p247, %s248, %s249
    %p253 = pneg %p247
    %p254 = scmp.eq.s32.totalorder %s18, 3
    %p255 = por %p253, %p254
    %p256 = scmp.ne.s32.totalorder %s248, %s251
    %p257 = scmp.eq.s32.totalorder %s18, 0
    %p258 = por %p256, %p257
    %p259 = scmp.ne.s32.totalorder %s248, %s251
    %p260 = scmp.eq.s32.totalorder %s23, 3
    %p261 = por %p259, %p260
    %p262 = scmp.ne.s32.totalorder %s251, %s252
    %p263 = scmp.eq.s32.totalorder %s23, 0
    %p264 = por %p262, %p263
    %p265 = scmp.ne.s32.totalorder %s251, %s252
    %p266 = scmp.eq.s32.totalorder %s24, 3
    %p267 = por %p265, %p266
    %p269 = scmp.ne.s32.totalorder %s252, %s268
    %p270 = scmp.eq.s32.totalorder %s24, 0
    %p271 = por %p269, %p270
    %s272 = ssub.s32 %s26, %s33
    %p273 = scmp.eq.s32.totalorder %s272, 0
    %s275 = sadd.s32 %s274, 1
    %s276 = scalar_select %p273, %s274, %s275
    %p279 = pneg %p273
    %p280 = scmp.eq.s32.totalorder %s18, 3
    %p281 = por %p279, %p280
    %p282 = scmp.ne.s32.totalorder %s274, %s277
    %p283 = scmp.eq.s32.totalorder %s18, 0
    %p284 = por %p282, %p283
    %p285 = scmp.ne.s32.totalorder %s274, %s277
    %p286 = scmp.eq.s32.totalorder %s23, 3
    %p287 = por %p285, %p286
    %p288 = scmp.ne.s32.totalorder %s277, %s278
    %p289 = scmp.eq.s32.totalorder %s23, 0
    %p290 = por %p288, %p289
    %p291 = scmp.ne.s32.totalorder %s277, %s278
    %p292 = scmp.eq.s32.totalorder %s24, 3
    %p293 = por %p291, %p292
    %p295 = scmp.ne.s32.totalorder %s278, %s294
    %p296 = scmp.eq.s32.totalorder %s24, 0
    %p297 = por %p295, %p296
    %s298 = ssub.s32 %s26, %s33
    %p299 = scmp.eq.s32.totalorder %s298, 0
    %s301 = sadd.s32 %s300, 1
    %s302 = scalar_select %p299, %s300, %s301
    %p305 = pneg %p299
    %p306 = scmp.eq.s32.totalorder %s18, 3
    %p307 = por %p305, %p306
    %p308 = scmp.ne.s32.totalorder %s300, %s303
    %p309 = scmp.eq.s32.totalorder %s18, 0
    %p310 = por %p308, %p309
    %p311 = scmp.ne.s32.totalorder %s300, %s303
    %p312 = scmp.eq.s32.totalorder %s23, 3
    %p313 = por %p311, %p312
    %p314 = scmp.ne.s32.totalorder %s303, %s304
    %p315 = scmp.eq.s32.totalorder %s23, 0
    %p316 = por %p314, %p315
    %p317 = scmp.ne.s32.totalorder %s303, %s304
    %p318 = scmp.eq.s32.totalorder %s24, 3
    %p319 = por %p317, %p318
    %p321 = scmp.ne.s32.totalorder %s304, %s320
    %p322 = scmp.eq.s32.totalorder %s24, 0
    %p323 = por %p321, %p322
    %s324 = ssub.s32 %s26, %s33
    %p325 = scmp.eq.s32.totalorder %s324, 0
    %s327 = sadd.s32 %s326, 1
    %s328 = scalar_select %p325, %s326, %s327
    %p331 = pneg %p325
    %p332 = scmp.eq.s32.totalorder %s18, 3
    %p333 = por %p331, %p332
    %p334 = scmp.ne.s32.totalorder %s326, %s329
    %p335 = scmp.eq.s32.totalorder %s18, 0
    %p336 = por %p334, %p335
    %p337 = scmp.ne.s32.totalorder %s326, %s329
    %p338 = scmp.eq.s32.totalorder %s23, 3
    %p339 = por %p337, %p338
    %p340 = scmp.ne.s32.totalorder %s329, %s330
    %p341 = scmp.eq.s32.totalorder %s23, 0
    %p342 = por %p340, %p341
    %p343 = scmp.ne.s32.totalorder %s329, %s330
    %p344 = scmp.eq.s32.totalorder %s24, 3
    %p345 = por %p343, %p344
    %p347 = scmp.ne.s32.totalorder %s330, %s346
    %p348 = scmp.eq.s32.totalorder %s24, 0
    %p349 = por %p347, %p348
    %s350 = ssub.s32 %s25, %s37
    %p351 = scmp.eq.s32.totalorder %s350, 0
    %s353 = sadd.s32 %s352, 1
    %s354 = scalar_select %p351, %s352, %s353
    %p357 = pneg %p351
    %p358 = scmp.eq.s32.totalorder %s18, 3
    %p359 = por %p357, %p358
    %p360 = scmp.ne.s32.totalorder %s352, %s355
    %p361 = scmp.eq.s32.totalorder %s18, 0
    %p362 = por %p360, %p361
    %p363 = scmp.ne.s32.totalorder %s352, %s355
    %p364 = scmp.eq.s32.totalorder %s23, 3
    %p365 = por %p363, %p364
    %p366 = scmp.ne.s32.totalorder %s355, %s356
    %p367 = scmp.eq.s32.totalorder %s23, 0
    %p368 = por %p366, %p367
    %p369 = scmp.ne.s32.totalorder %s355, %s356
    %p370 = scmp.eq.s32.totalorder %s24, 3
    %p371 = por %p369, %p370
    %p373 = scmp.ne.s32.totalorder %s356, %s372
    %p374 = scmp.eq.s32.totalorder %s24, 0
    %p375 = por %p373, %p374
    %p376 = scmp.le.s32.totalorder 1, %s18
    %p377 = scmp.lt.s32.totalorder %s18, 5
    %p378 = pnand %p376, %p377
    %p379 = pneg %p378
    // Predicated region
    $region9: #{vit_forward_pallas.1} parent=5 // pred_check
      _
    $region10: #{vit_forward_pallas.1} parent=5 // pred_check_branch
      %381 = sbr.rel (%p378) target = $region12
    $region11: #{vit_forward_pallas.1} parent=5 // pred_region
      %s382 = ssub.s32 %s18, 1
    $region12: #{vit_forward_pallas.1} parent=5 // pred_fallthru
      _
    %p383 = scmp.lt.s32.totalorder %s18, 4
    // Predicated region
    $region13: #{vit_forward_pallas.1} parent=5 // pred_check
      %p384 = pneg %p383
    $region14: #{vit_forward_pallas.1} parent=5 // pred_check_branch
      %386 = sbr.rel (%p384) target = $region16
    $region15: #{vit_forward_pallas.1} parent=5 // pred_region
      // Predicated region
      $region17: #{vit_forward_pallas.1} parent=15 // pred_check
        %p387 = pneg %p50
      $region18: #{vit_forward_pallas.1} parent=15 // pred_check_branch
        %389 = sbr.rel (%p387) target = $region20
      $region19: #{vit_forward_pallas.1} parent=15 // pred_region
        %s390 = smul.u32 2, %s25
        %p391 = scmp.lt.s32.totalorder %s390, 3
        %s392 = scalar_select %p391, %s390, 3
        %s393 = smul.addr %s392, 8
        %s394 = scalar_lea.vmem %s0, %s393
        %s395 = smul.u32 2, %s25
      $region20: #{vit_forward_pallas.1} parent=15 // pred_fallthru
        _
      // Predicated region
      $region21: #{vit_forward_pallas.1} parent=15 // pred_check
        %p396 = pneg %p76
      $region22: #{vit_forward_pallas.1} parent=15 // pred_check_branch
        %398 = sbr.rel (%p396) target = $region24
      $region23: #{vit_forward_pallas.1} parent=15 // pred_region
        %p399 = scmp.lt.s32.totalorder %s26, 1
        %s400 = scalar_select %p399, %s26, 1
        %s401 = scalar_lea.vmem %s1, %s400
      $region24: #{vit_forward_pallas.1} parent=15 // pred_fallthru
        _
      // Predicated region
      $region25: #{vit_forward_pallas.1} parent=15 // pred_check
        %p402 = pneg %p102
      $region26: #{vit_forward_pallas.1} parent=15 // pred_check_branch
        %404 = sbr.rel (%p402) target = $region28
      $region27: #{vit_forward_pallas.1} parent=15 // pred_region
        %p405 = scmp.lt.s32.totalorder %s26, 1
        %s406 = scalar_select %p405, %s26, 1
        %s407 = scalar_lea.vmem %s2, %s406
      $region28: #{vit_forward_pallas.1} parent=15 // pred_fallthru
        _
      // Predicated region
      $region29: #{vit_forward_pallas.1} parent=15 // pred_check
        %p408 = pneg %p128
      $region30: #{vit_forward_pallas.1} parent=15 // pred_check_branch
        %410 = sbr.rel (%p408) target = $region32
      $region31: #{vit_forward_pallas.1} parent=15 // pred_region
        %p411 = scmp.lt.s32.totalorder %s26, 1
        %s412 = scalar_select %p411, %s26, 1
        %s413 = smul.addr %s412, 4
        %s414 = smul.addr %s413, 4
        %s415 = scalar_lea.vmem %s3, %s414
      $region32: #{vit_forward_pallas.1} parent=15 // pred_fallthru
        _
      // Predicated region
      $region33: #{vit_forward_pallas.1} parent=15 // pred_check
        %p416 = pneg %p154
      $region34: #{vit_forward_pallas.1} parent=15 // pred_check_branch
        %418 = sbr.rel (%p416) target = $region36
      $region35: #{vit_forward_pallas.1} parent=15 // pred_region
        %p419 = scmp.lt.s32.totalorder %s26, 1
        %s420 = scalar_select %p419, %s26, 1
        %s421 = smul.addr %s420, 4
        %s422 = smul.addr %s421, 4
        %s423 = scalar_lea.vmem %s4, %s422
      $region36: #{vit_forward_pallas.1} parent=15 // pred_fallthru
        _
      // Predicated region
      $region37: #{vit_forward_pallas.1} parent=15 // pred_check
        %p424 = pneg %p180
      $region38: #{vit_forward_pallas.1} parent=15 // pred_check_branch
        %426 = sbr.rel (%p424) target = $region40
      $region39: #{vit_forward_pallas.1} parent=15 // pred_region
        %p427 = scmp.lt.s32.totalorder %s26, 1
        %s428 = scalar_select %p427, %s26, 1
        %s429 = scalar_lea.vmem %s5, %s428
      $region40: #{vit_forward_pallas.1} parent=15 // pred_fallthru
        _
      // Predicated region
      $region41: #{vit_forward_pallas.1} parent=15 // pred_check
        %p430 = pneg %p206
      $region42: #{vit_forward_pallas.1} parent=15 // pred_check_branch
        %432 = sbr.rel (%p430) target = $region44
      $region43: #{vit_forward_pallas.1} parent=15 // pred_region
        %p433 = scmp.lt.s32.totalorder %s26, 1
        %s434 = scalar_select %p433, %s26, 1
        %s435 = scalar_lea.vmem %s6, %s434
      $region44: #{vit_forward_pallas.1} parent=15 // pred_fallthru
        _
      // Predicated region
      $region45: #{vit_forward_pallas.1} parent=15 // pred_check
        %p436 = pneg %p232
      $region46: #{vit_forward_pallas.1} parent=15 // pred_check_branch
        %438 = sbr.rel (%p436) target = $region48
      $region47: #{vit_forward_pallas.1} parent=15 // pred_region
        %p439 = scmp.lt.s32.totalorder %s26, 1
        %s440 = scalar_select %p439, %s26, 1
        %s441 = scalar_lea.vmem %s7, %s440
      $region48: #{vit_forward_pallas.1} parent=15 // pred_fallthru
        _
      // Predicated region
      $region49: #{vit_forward_pallas.1} parent=15 // pred_check
        %p442 = pneg %p258
      $region50: #{vit_forward_pallas.1} parent=15 // pred_check_branch
        %444 = sbr.rel (%p442) target = $region52
      $region51: #{vit_forward_pallas.1} parent=15 // pred_region
        %p445 = scmp.lt.s32.totalorder %s26, 1
        %s446 = scalar_select %p445, %s26, 1
        %s447 = smul.addr %s446, 4
        %s448 = smul.addr %s447, 4
        %s449 = scalar_lea.vmem %s8, %s448
      $region52: #{vit_forward_pallas.1} parent=15 // pred_fallthru
        _
      // Predicated region
      $region53: #{vit_forward_pallas.1} parent=15 // pred_check
        %p450 = pneg %p284
      $region54: #{vit_forward_pallas.1} parent=15 // pred_check_branch
        %452 = sbr.rel (%p450) target = $region56
      $region55: #{vit_forward_pallas.1} parent=15 // pred_region
        %p453 = scmp.lt.s32.totalorder %s26, 1
        %s454 = scalar_select %p453, %s26, 1
        %s455 = scalar_lea.vmem %s9, %s454
      $region56: #{vit_forward_pallas.1} parent=15 // pred_fallthru
        _
      // Predicated region
      $region57: #{vit_forward_pallas.1} parent=15 // pred_check
        %p456 = pneg %p310
      $region58: #{vit_forward_pallas.1} parent=15 // pred_check_branch
        %458 = sbr.rel (%p456) target = $region60
      $region59: #{vit_forward_pallas.1} parent=15 // pred_region
        %p459 = scmp.lt.s32.totalorder %s26, 1
        %s460 = scalar_select %p459, %s26, 1
        %s461 = smul.addr %s460, 8
        %s462 = smul.addr %s461, 4
        %s463 = scalar_lea.vmem %s10, %s462
      $region60: #{vit_forward_pallas.1} parent=15 // pred_fallthru
        _
      // Predicated region
      $region61: #{vit_forward_pallas.1} parent=15 // pred_check
        %p464 = pneg %p336
      $region62: #{vit_forward_pallas.1} parent=15 // pred_check_branch
        %466 = sbr.rel (%p464) target = $region64
      $region63: #{vit_forward_pallas.1} parent=15 // pred_region
        %p467 = scmp.lt.s32.totalorder %s26, 1
        %s468 = scalar_select %p467, %s26, 1
        %s469 = scalar_lea.vmem %s11, %s468
      $region64: #{vit_forward_pallas.1} parent=15 // pred_fallthru
        _
    $region16: #{vit_forward_pallas.1} parent=5 // pred_fallthru
      _
    %p470 = scmp.le.s32.totalorder 1, %s18
    %p471 = scmp.lt.s32.totalorder %s18, 5
    %p472 = pnand %p470, %p471
    %p473 = pneg %p472
    // Predicated region
    $region65: #{vit_forward_pallas.1} parent=5 // pred_check
      _
    $region66: #{vit_forward_pallas.1} parent=5 // pred_check_branch
      %475 = sbr.rel (%p472) target = $region68
    $region67: #{vit_forward_pallas.1} parent=5 // pred_region
      %s476 = ssub.s32 %s18, 1
      %s477 = smul.u32 2, %s27
      %p478 = scmp.lt.s32.totalorder %s477, 3
      %s479 = scalar_select %p478, %s477, 3
      %s480 = smul.addr %s479, 8
      %s481 = scalar_lea.vmem %s0, %s480
      %p482 = pneg %p56
      %p483 = pneg %p53
      %p484 = scmp.lt.s32.totalorder %s28, 1
      %s485 = scalar_select %p484, %s28, 1
      %s486 = scalar_lea.vmem %s1, %s485
      %p487 = pneg %p82
      %p488 = pneg %p79
      %p489 = scmp.lt.s32.totalorder %s28, 1
      %s490 = scalar_select %p489, %s28, 1
      %s491 = scalar_lea.vmem %s2, %s490
      %p492 = pneg %p108
      %p493 = pneg %p105
      %p494 = scmp.lt.s32.totalorder %s28, 1
      %s495 = scalar_select %p494, %s28, 1
      %s496 = smul.addr %s495, 4
      %s497 = smul.addr %s496, 4
      %s498 = scalar_lea.vmem %s3, %s497
      %p499 = pneg %p134
      %p500 = pneg %p131
      %p501 = scmp.lt.s32.totalorder %s28, 1
      %s502 = scalar_select %p501, %s28, 1
      %s503 = smul.addr %s502, 4
      %s504 = smul.addr %s503, 4
      %s505 = scalar_lea.vmem %s4, %s504
      %p506 = pneg %p160
      %p507 = pneg %p157
      %p508 = scmp.lt.s32.totalorder %s28, 1
      %s509 = scalar_select %p508, %s28, 1
      %s510 = scalar_lea.vmem %s5, %s509
      %p511 = pneg %p186
      %p512 = pneg %p183
      %p513 = scmp.lt.s32.totalorder %s28, 1
      %s514 = scalar_select %p513, %s28, 1
      %s515 = scalar_lea.vmem %s6, %s514
      %p516 = pneg %p212
      %p517 = pneg %p209
      %p518 = scmp.lt.s32.totalorder %s28, 1
      %s519 = scalar_select %p518, %s28, 1
      %s520 = scalar_lea.vmem %s7, %s519
      %p521 = pneg %p238
      %p522 = pneg %p235
      %p523 = scmp.lt.s32.totalorder %s28, 1
      %s524 = scalar_select %p523, %s28, 1
      %s525 = smul.addr %s524, 4
      %s526 = smul.addr %s525, 4
      %s527 = scalar_lea.vmem %s8, %s526
      %p528 = pneg %p264
      %p529 = pneg %p261
      %p530 = scmp.lt.s32.totalorder %s28, 1
      %s531 = scalar_select %p530, %s28, 1
      %s532 = scalar_lea.vmem %s9, %s531
      %p533 = pneg %p290
      %p534 = pneg %p287
      %p535 = scmp.lt.s32.totalorder %s28, 1
      %s536 = scalar_select %p535, %s28, 1
      %s537 = smul.addr %s536, 8
      %s538 = smul.addr %s537, 4
      %s539 = scalar_lea.vmem %s10, %s538
      %p540 = pneg %p316
      %p541 = pneg %p313
      %p542 = scmp.lt.s32.totalorder %s28, 1
      %s543 = scalar_select %p542, %s28, 1
      %s544 = scalar_lea.vmem %s11, %s543
      %p545 = pneg %p342
      %p546 = pneg %p339
      %p547 = pneg %p368
      %p548 = pneg %p365
      %s549 = smul.u32 2, %s27
      %p550 = scmp.lt.s32.totalorder %s549, 3
      %s551 = scalar_select %p550, %s549, 3
      %s552 = smul.addr %s551, 8
      %s553 = scalar_lea.vmem %s12, %s552
      %s554 = smul.u32 2, %s27
      %p555 = scmp.lt.s32.totalorder %s554, 3
      %s556 = scalar_select %p555, %s554, 3
      %s557 = smul.addr %s556, 8
      %s558 = scalar_lea.vmem %s0, %s557
      %s559 = smul.u32 2, %s27
      %p560 = scmp.lt.s32.totalorder %s28, 1
      %s561 = scalar_select %p560, %s28, 1
      %s562 = scalar_lea.vmem %s1, %s561
      %p563 = scmp.lt.s32.totalorder %s28, 1
      %s564 = scalar_select %p563, %s28, 1
      %s565 = scalar_lea.vmem %s2, %s564
      %p566 = scmp.lt.s32.totalorder %s28, 1
      %s567 = scalar_select %p566, %s28, 1
      %s568 = smul.addr %s567, 4
      %s569 = smul.addr %s568, 4
      %s570 = scalar_lea.vmem %s3, %s569
      %p571 = scmp.lt.s32.totalorder %s28, 1
      %s572 = scalar_select %p571, %s28, 1
      %s573 = smul.addr %s572, 4
      %s574 = smul.addr %s573, 4
      %s575 = scalar_lea.vmem %s4, %s574
      %p576 = scmp.lt.s32.totalorder %s28, 1
      %s577 = scalar_select %p576, %s28, 1
      %s578 = scalar_lea.vmem %s5, %s577
      %p579 = scmp.lt.s32.totalorder %s28, 1
      %s580 = scalar_select %p579, %s28, 1
      %s581 = scalar_lea.vmem %s6, %s580
      %p582 = scmp.lt.s32.totalorder %s28, 1
      %s583 = scalar_select %p582, %s28, 1
      %s584 = scalar_lea.vmem %s7, %s583
      %p585 = scmp.lt.s32.totalorder %s28, 1
      %s586 = scalar_select %p585, %s28, 1
      %s587 = smul.addr %s586, 4
      %s588 = smul.addr %s587, 4
      %s589 = scalar_lea.vmem %s8, %s588
      %p590 = scmp.lt.s32.totalorder %s28, 1
      %s591 = scalar_select %p590, %s28, 1
      %s592 = scalar_lea.vmem %s9, %s591
      %p593 = scmp.lt.s32.totalorder %s28, 1
      %s594 = scalar_select %p593, %s28, 1
      %s595 = smul.addr %s594, 8
      %s596 = smul.addr %s595, 4
      %s597 = scalar_lea.vmem %s10, %s596
      %p598 = scmp.lt.s32.totalorder %s28, 1
      %s599 = scalar_select %p598, %s28, 1
      %s600 = scalar_lea.vmem %s11, %s599
      %s601 = smul.u32 2, %s27
      %p602 = scmp.lt.s32.totalorder %s601, 3
      %s603 = scalar_select %p602, %s601, 3
      %s604 = smul.addr %s603, 8
      %s605 = scalar_lea.vmem %s12, %s604
      %s606 = smul.u32 2, %s27
      %p608 = scmp.eq.s32.totalorder %s28, 0
      // Predicated region
      $region69: #{vit_forward_pallas.1} parent=67 // pred_check
        %p609 = pneg %p608
      $region70: #{vit_forward_pallas.1} parent=67 // pred_check_branch
        %611 = sbr.rel (%p609) target = $region72
      $region71: #{vit_forward_pallas.1} parent=67 // pred_region
        %v612 = vld [vmem:[%s558] sm:$0xff]
        %v613 = vld [vmem:[%s558 + $0x8] sm:$0xff]
        %vm614 = vcmask 261120
        %615 = vst.msk [vmem:[#allocation2] sm:$0xff] %vm614, %v612
        %616 = vst.msk [vmem:[#allocation2 + $0x8] sm:$0xff] %vm614, %v613
      $region72: #{vit_forward_pallas.1} parent=67 // pred_fallthru
        _
      %v617 = vld [vmem:[#allocation2] sm:$0xff]
      %v618 = vld [vmem:[#allocation2 + $0x8] sm:$0xff]
      %v619 = vld [vmem:[%s562] sm:$0x1]
      %v620 = vld [vmem:[%s565] sm:$0x1]
      %vm621 = vcmask 261120
      %v622 = vsel %vm621, %v617, 0.0
      %623 = vadd.xlane.f32.xlu0 %v622
      %v624 = vpop.xlane.xlu0 %623
      %v625 = vsel %vm621, %v618, 0.0
      %626 = vadd.xlane.f32.xlu0 %v625
      %v627 = vpop.xlane.xlu0 %626
      %v628 = vrcp.pop 32.0
      %v629 = vmul.f32 %v624, %v628
      %v630 = vmul.f32 %v627, %v628
      %v631 = vsub.f32 %v617, %v629
      %v632 = vsub.f32 %v618, %v630
      %v633 = vmul.f32 %v631, %v631
      %v634 = vmul.f32 %v632, %v632
      %v635 = vsel %vm621, %v633, 0.0
      %636 = vadd.xlane.f32.xlu0 %v635
      %v637 = vpop.xlane.xlu0 %636
      %v638 = vsel %vm621, %v634, 0.0
      %639 = vadd.xlane.f32.xlu0 %v638
      %v640 = vpop.xlane.xlu0 %639
      %v641 = vmul.f32 %v637, %v628
      %v642 = vmul.f32 %v640, %v628
      %v643 = vadd.f32 %v641, 1e-05
      %v644 = vadd.f32 %v642, 1e-05
      %v645 = vrsqrt.pop %v643
      %v646 = vrsqrt.pop %v644
      %v647 = vmul.f32 %v631, %v645
      %v648 = vmul.f32 %v632, %v646
      %v650 = vlaneseq
      %v651 = vshrl.u32 %v650, 7
      %v652 = vsub.s32 0, %v651
      %v653 = vrot.slane %v619, %v652
      %v655 = vmul.f32 %v647, %v653
      %v656 = vmul.f32 %v648, %v653
      %v658 = vlaneseq
      %v659 = vshrl.u32 %v658, 7
      %v660 = vsub.s32 0, %v659
      %v661 = vrot.slane %v620, %v660
      %v663 = vadd.f32 %v655, %v661
      %v664 = vadd.f32 %v656, %v661
      %v665 = vld [vmem:[%s570] sm:$0xf]
      %v666 = vld [vmem:[%s570 + $0x4] sm:$0xf]
      %v667 = vld [vmem:[%s570 + $0x8] sm:$0xf]
      %v668 = vld [vmem:[%s570 + $0xc] sm:$0xf]
      %v669 = vpack.c.bf16 %v664, %v663
      %v674 = vunpack.c.l.b16 %v665
      %v675 = vunpack.c.l.b16 %v666
      %v676 = vunpack.c.l.b16 %v667
      %v677 = vunpack.c.l.b16 %v668
      %v678 = vpack.c.b16 %v675, %v674
      %v679 = vpack.c.b16 %v677, %v676
      %v683 = vsel %vm621, %v669, 0
      %685 = vmatprep.subr.bf16.mxu0 0
      %686 = vmatpush1.bf16.msra.mxu0 0
      %687 = vmatprep.subr.bf16.mxu0 0
      %688 = vmatpush1.bf16.msra.mxu0 0
      %689 = vmatprep.subr.bf16.mxu0 0
      %690 = vmatpush1.bf16.msra.mxu0 0
      %691 = vmatprep.subr.bf16.mxu0 0
      %692 = vmatpush1.bf16.msra.mxu0 0
      %693 = vmatprep.subr.bf16.mxu0 0
      %694 = vmatpush1.bf16.msra.mxu0 0
      %695 = vmatprep.subr.bf16.mxu0 0
      %696 = vmatpush1.bf16.msra.mxu0 0
      %697 = vmatprep.subr.bf16.mxu0 0
      %698 = vmatpush1.bf16.msra.mxu0 %v679
      %699 = vmatprep.subr.bf16.mxu0 0
      %700 = vmatpush1.bf16.msra.mxu0 %v678
      %701 = vmatprep.subr.bf16.mxu0 0
      %702 = vmatpush2.bf16.msra.mxu0 0
      %703 = vmatprep.subr.bf16.mxu0 0
      %704 = vmatpush2.bf16.msra.mxu0 0
      %705 = vmatprep.subr.bf16.mxu0 0
      %706 = vmatpush2.bf16.msra.mxu0 0
      %707 = vmatprep.subr.bf16.mxu0 0
      %708 = vmatpush2.bf16.msra.mxu0 0
      %709 = vmatprep.subr.bf16.mxu0 0
      %710 = vmatpush2.bf16.msra.mxu0 0
      %711 = vmatprep.subr.bf16.mxu0 0
      %712 = vmatpush2.bf16.msra.mxu0 0
      %713 = vmatprep.subr.bf16.mxu0 0
      %714 = vmatpush2.bf16.msra.mxu0 0
      %715 = vmatprep.subr.bf16.mxu0 0
      %716 = vmatpush2.bf16.msra.mxu0 0
      %717 = vmatprep.mubr.bf16.mxu0 0
      %718 = vmatmul.mubr.bf16.gmra.mxu0 %v683
      %v719 = vpop.f32.mrf.mxu0
      %v720 = vadd.f32 0.0, %v719
      %v721 = vpop.f32.mrf.mxu0
      %v722 = vpop.f32.mrf.mxu0
      %v723 = vadd.f32 0.0, %v722
      %v724 = vpop.f32.mrf.mxu0
      %725 = vdwg.mxu0
      %v726 = vpack.c.bf16 %v723, %v720
      %v727 = vlaneseq
      %v728 = vand.u32 %v727, 127
      %vm729 = vcmp.lt.s32.totalorder %v728, 5
      %v730 = vsel %vm729, 0.0, -1e+30
      %732 = vrot.lane.b32.xlu0 %v726, 96
      %v733 = vpop.permute.xlu0 %732
      %vm734 = vcmask 130048
      %v736 = vsel %vm734, %v726, 0
      %v739 = vsel %vm734, %v733, 0
      %741 = vmatprep.subr.bf16.mxu0 0
      %742 = vmatpush1.bf16.xpose.msra.mxu0 0
      %743 = vmatprep.subr.bf16.mxu0 0
      %744 = vmatpush1.bf16.xpose.msra.mxu0 0
      %745 = vmatprep.subr.bf16.mxu0 0
      %746 = vmatpush1.bf16.xpose.msra.mxu0 0
      %747 = vmatprep.subr.bf16.mxu0 0
      %748 = vmatpush1.bf16.xpose.msra.mxu0 0
      %749 = vmatprep.subr.bf16.mxu0 0
      %750 = vmatpush1.bf16.xpose.msra.mxu0 0
      %751 = vmatprep.subr.bf16.mxu0 0
      %752 = vmatpush1.bf16.xpose.msra.mxu0 0
      %753 = vmatprep.subr.bf16.mxu0 0
      %754 = vmatpush1.bf16.xpose.msra.mxu0 0
      %755 = vmatprep.subr.bf16.mxu0 0
      %756 = vmatpush1.bf16.xpose.msra.mxu0 %v739
      %757 = vmatprep.subr.bf16.mxu0 0
      %758 = vmatpush2.bf16.xpose.msra.mxu0 0
      %759 = vmatprep.subr.bf16.mxu0 0
      %760 = vmatpush2.bf16.xpose.msra.mxu0 0
      %761 = vmatprep.subr.bf16.mxu0 0
      %762 = vmatpush2.bf16.xpose.msra.mxu0 0
      %763 = vmatprep.subr.bf16.mxu0 0
      %764 = vmatpush2.bf16.xpose.msra.mxu0 0
      %765 = vmatprep.subr.bf16.mxu0 0
      %766 = vmatpush2.bf16.xpose.msra.mxu0 0
      %767 = vmatprep.subr.bf16.mxu0 0
      %768 = vmatpush2.bf16.xpose.msra.mxu0 0
      %769 = vmatprep.subr.bf16.mxu0 0
      %770 = vmatpush2.bf16.xpose.msra.mxu0 0
      %771 = vmatprep.subr.bf16.mxu0 0
      %772 = vmatpush2.bf16.xpose.msra.mxu0 0
      %773 = vmatprep.mubr.bf16.mxu0 0
      %774 = vmatmul.mubr.bf16.gmra.mxu0 %v736
      %v775 = vpop.f32.mrf.mxu0
      %v776 = vadd.f32 0.0, %v775
      %v777 = vpop.f32.mrf.mxu0
      %v778 = vpop.f32.mrf.mxu0
      %v779 = vadd.f32 0.0, %v778
      %v780 = vpop.f32.mrf.mxu0
      %781 = vdwg.mxu0
      %v782 = vmul.f32 %v776, 0.25
      %v783 = vmul.f32 %v779, 0.25
      %v784 = vadd.f32 %v782, %v730
      %v785 = vadd.f32 %v783, %v730
      %v786 = vsel %vm734, %v784, -inf
      %787 = vmax.xlane.f32.xlu0 %v786
      %v788 = vpop.xlane.xlu0 %787
      %v789 = vsel %vm734, %v785, -inf
      %790 = vmax.xlane.f32.xlu0 %v789
      %v791 = vpop.xlane.xlu0 %790
      %v792 = vsub.f32 %v784, %v788
      %v793 = vsub.f32 %v785, %v791
      %v794 = vmul.f32 %v792, 1.442695
      %v795 = vpow.pop %v794
      %v796 = vmul.f32 %v793, 1.442695
      %v797 = vpow.pop %v796
      %v798 = vsel %vm734, %v795, 0.0
      %799 = vadd.xlane.f32.xlu0 %v798
      %v800 = vpop.xlane.xlu0 %799
      %v801 = vsel %vm734, %v797, 0.0
      %802 = vadd.xlane.f32.xlu0 %v801
      %v803 = vpop.xlane.xlu0 %802
      %v804 = vrcp.pop %v800
      %v805 = vrcp.pop %v803
      %v806 = vmul.f32 %v795, %v804
      %v807 = vmul.f32 %v797, %v805
      %v808 = vpack.c.bf16 %v807, %v806
      %809 = vrot.lane.b32.xlu0 %v726, 64
      %v810 = vpop.permute.xlu0 %809
      %v813 = vsel %vm734, %v808, 0
      %815 = vmatprep.subr.bf16.mxu0 0
      %816 = vmatpush1.bf16.msra.mxu0 0
      %817 = vmatprep.subr.bf16.mxu0 0
      %818 = vmatpush1.bf16.msra.mxu0 0
      %819 = vmatprep.subr.bf16.mxu0 0
      %820 = vmatpush1.bf16.msra.mxu0 0
      %821 = vmatprep.subr.bf16.mxu0 0
      %822 = vmatpush1.bf16.msra.mxu0 0
      %823 = vmatprep.subr.bf16.mxu0 0
      %824 = vmatpush1.bf16.msra.mxu0 0
      %825 = vmatprep.subr.bf16.mxu0 0
      %826 = vmatpush1.bf16.msra.mxu0 0
      %827 = vmatprep.subr.bf16.mxu0 0
      %828 = vmatpush1.bf16.msra.mxu0 0
      %829 = vmatprep.subr.bf16.mxu0 0
      %830 = vmatpush1.bf16.msra.mxu0 %v810
      %831 = vmatprep.subr.bf16.mxu0 0
      %832 = vmatpush2.bf16.msra.mxu0 0
      %833 = vmatprep.subr.bf16.mxu0 0
      %834 = vmatpush2.bf16.msra.mxu0 0
      %835 = vmatprep.subr.bf16.mxu0 0
      %836 = vmatpush2.bf16.msra.mxu0 0
      %837 = vmatprep.subr.bf16.mxu0 0
      %838 = vmatpush2.bf16.msra.mxu0 0
      %839 = vmatprep.subr.bf16.mxu0 0
      %840 = vmatpush2.bf16.msra.mxu0 0
      %841 = vmatprep.subr.bf16.mxu0 0
      %842 = vmatpush2.bf16.msra.mxu0 0
      %843 = vmatprep.subr.bf16.mxu0 0
      %844 = vmatpush2.bf16.msra.mxu0 0
      %845 = vmatprep.subr.bf16.mxu0 0
      %846 = vmatpush2.bf16.msra.mxu0 0
      %847 = vmatprep.mubr.bf16.mxu0 0
      %848 = vmatmul.mubr.bf16.gmra.mxu0 %v813
      %v849 = vpop.f32.mrf.mxu0
      %v850 = vadd.f32 0.0, %v849
      %v851 = vpop.f32.mrf.mxu0
      %v852 = vpop.f32.mrf.mxu0
      %v853 = vadd.f32 0.0, %v852
      %v854 = vpop.f32.mrf.mxu0
      %855 = vdwg.mxu0
      %856 = vrot.lane.b32.xlu0 %v726, 112
      %v857 = vpop.permute.xlu0 %856
      %858 = vrot.lane.b32.xlu0 %v726, 80
      %v859 = vpop.permute.xlu0 %858
      %v861 = vsel %vm734, %v857, 0
      %v864 = vsel %vm734, %v859, 0
      %866 = vmatprep.subr.bf16.mxu0 0
      %867 = vmatpush1.bf16.xpose.msra.mxu0 0
      %868 = vmatprep.subr.bf16.mxu0 0
      %869 = vmatpush1.bf16.xpose.msra.mxu0 0
      %870 = vmatprep.subr.bf16.mxu0 0
      %871 = vmatpush1.bf16.xpose.msra.mxu0 0
      %872 = vmatprep.subr.bf16.mxu0 0
      %873 = vmatpush1.bf16.xpose.msra.mxu0 0
      %874 = vmatprep.subr.bf16.mxu0 0
      %875 = vmatpush1.bf16.xpose.msra.mxu0 0
      %876 = vmatprep.subr.bf16.mxu0 0
      %877 = vmatpush1.bf16.xpose.msra.mxu0 0
      %878 = vmatprep.subr.bf16.mxu0 0
      %879 = vmatpush1.bf16.xpose.msra.mxu0 0
      %880 = vmatprep.subr.bf16.mxu0 0
      %881 = vmatpush1.bf16.xpose.msra.mxu0 %v864
      %882 = vmatprep.subr.bf16.mxu0 0
      %883 = vmatpush2.bf16.xpose.msra.mxu0 0
      %884 = vmatprep.subr.bf16.mxu0 0
      %885 = vmatpush2.bf16.xpose.msra.mxu0 0
      %886 = vmatprep.subr.bf16.mxu0 0
      %887 = vmatpush2.bf16.xpose.msra.mxu0 0
      %888 = vmatprep.subr.bf16.mxu0 0
      %889 = vmatpush2.bf16.xpose.msra.mxu0 0
      %890 = vmatprep.subr.bf16.mxu0 0
      %891 = vmatpush2.bf16.xpose.msra.mxu0 0
      %892 = vmatprep.subr.bf16.mxu0 0
      %893 = vmatpush2.bf16.xpose.msra.mxu0 0
      %894 = vmatprep.subr.bf16.mxu0 0
      %895 = vmatpush2.bf16.xpose.msra.mxu0 0
      %896 = vmatprep.subr.bf16.mxu0 0
      %897 = vmatpush2.bf16.xpose.msra.mxu0 0
      %898 = vmatprep.mubr.bf16.mxu0 0
      %899 = vmatmul.mubr.bf16.gmra.mxu0 %v861
      %v900 = vpop.f32.mrf.mxu0
      %v901 = vadd.f32 0.0, %v900
      %v902 = vpop.f32.mrf.mxu0
      %v903 = vpop.f32.mrf.mxu0
      %v904 = vadd.f32 0.0, %v903
      %v905 = vpop.f32.mrf.mxu0
      %906 = vdwg.mxu0
      %v907 = vmul.f32 %v901, 0.25
      %v908 = vmul.f32 %v904, 0.25
      %v909 = vadd.f32 %v907, %v730
      %v910 = vadd.f32 %v908, %v730
      %v911 = vsel %vm734, %v909, -inf
      %912 = vmax.xlane.f32.xlu0 %v911
      %v913 = vpop.xlane.xlu0 %912
      %v914 = vsel %vm734, %v910, -inf
      %915 = vmax.xlane.f32.xlu0 %v914
      %v916 = vpop.xlane.xlu0 %915
      %v917 = vsub.f32 %v909, %v913
      %v918 = vsub.f32 %v910, %v916
      %v919 = vmul.f32 %v917, 1.442695
      %v920 = vpow.pop %v919
      %v921 = vmul.f32 %v918, 1.442695
      %v922 = vpow.pop %v921
      %v923 = vsel %vm734, %v920, 0.0
      %924 = vadd.xlane.f32.xlu0 %v923
      %v925 = vpop.xlane.xlu0 %924
      %v926 = vsel %vm734, %v922, 0.0
      %927 = vadd.xlane.f32.xlu0 %v926
      %v928 = vpop.xlane.xlu0 %927
      %v929 = vrcp.pop %v925
      %v930 = vrcp.pop %v928
      %v931 = vmul.f32 %v920, %v929
      %v932 = vmul.f32 %v922, %v930
      %v933 = vpack.c.bf16 %v932, %v931
      %934 = vrot.lane.b32.xlu0 %v726, 48
      %v935 = vpop.permute.xlu0 %934
      %v938 = vsel %vm734, %v933, 0
      %940 = vmatprep.subr.bf16.mxu0 0
      %941 = vmatpush1.bf16.msra.mxu0 0
      %942 = vmatprep.subr.bf16.mxu0 0
      %943 = vmatpush1.bf16.msra.mxu0 0
      %944 = vmatprep.subr.bf16.mxu0 0
      %945 = vmatpush1.bf16.msra.mxu0 0
      %946 = vmatprep.subr.bf16.mxu0 0
      %947 = vmatpush1.bf16.msra.mxu0 0
      %948 = vmatprep.subr.bf16.mxu0 0
      %949 = vmatpush1.bf16.msra.mxu0 0
      %950 = vmatprep.subr.bf16.mxu0 0
      %951 = vmatpush1.bf16.msra.mxu0 0
      %952 = vmatprep.subr.bf16.mxu0 0
      %953 = vmatpush1.bf16.msra.mxu0 0
      %954 = vmatprep.subr.bf16.mxu0 0
      %955 = vmatpush1.bf16.msra.mxu0 %v935
      %956 = vmatprep.subr.bf16.mxu0 0
      %957 = vmatpush2.bf16.msra.mxu0 0
      %958 = vmatprep.subr.bf16.mxu0 0
      %959 = vmatpush2.bf16.msra.mxu0 0
      %960 = vmatprep.subr.bf16.mxu0 0
      %961 = vmatpush2.bf16.msra.mxu0 0
      %962 = vmatprep.subr.bf16.mxu0 0
      %963 = vmatpush2.bf16.msra.mxu0 0
      %964 = vmatprep.subr.bf16.mxu0 0
      %965 = vmatpush2.bf16.msra.mxu0 0
      %966 = vmatprep.subr.bf16.mxu0 0
      %967 = vmatpush2.bf16.msra.mxu0 0
      %968 = vmatprep.subr.bf16.mxu0 0
      %969 = vmatpush2.bf16.msra.mxu0 0
      %970 = vmatprep.subr.bf16.mxu0 0
      %971 = vmatpush2.bf16.msra.mxu0 0
      %972 = vmatprep.mubr.bf16.mxu0 0
      %973 = vmatmul.mubr.bf16.gmra.mxu0 %v938
      %v974 = vpop.f32.mrf.mxu0
      %v975 = vadd.f32 0.0, %v974
      %v976 = vpop.f32.mrf.mxu0
      %v977 = vpop.f32.mrf.mxu0
      %v978 = vadd.f32 0.0, %v977
      %v979 = vpop.f32.mrf.mxu0
      %980 = vdwg.mxu0
      %983 = vrot.lane.b32.xlu0 %v975, 16
      %v984 = vpop.permute.xlu0 %983
      %985 = vrot.lane.b32.xlu0 %v978, 16
      %v986 = vpop.permute.xlu0 %985
      %v989 = vsel %vm734, %v850, %v984
      %v990 = vsel %vm734, %v853, %v986
      %v991 = vld [vmem:[%s575] sm:$0xf]
      %v992 = vld [vmem:[%s575 + $0x4] sm:$0xf]
      %v993 = vld [vmem:[%s575 + $0x8] sm:$0xf]
      %v994 = vld [vmem:[%s575 + $0xc] sm:$0xf]
      %v995 = vpack.c.bf16 %v990, %v989
      %v1000 = vunpack.c.l.b16 %v991
      %v1001 = vunpack.c.l.b16 %v992
      %v1002 = vunpack.c.l.b16 %v993
      %v1003 = vunpack.c.l.b16 %v994
      %v1004 = vpack.c.b16 %v1001, %v1000
      %v1005 = vpack.c.b16 %v1003, %v1002
      %v1009 = vsel %vm621, %v995, 0
      %1011 = vmatprep.subr.bf16.mxu0 0
      %1012 = vmatpush1.bf16.msra.mxu0 0
      %1013 = vmatprep.subr.bf16.mxu0 0
      %1014 = vmatpush1.bf16.msra.mxu0 0
      %1015 = vmatprep.subr.bf16.mxu0 0
      %1016 = vmatpush1.bf16.msra.mxu0 0
      %1017 = vmatprep.subr.bf16.mxu0 0
      %1018 = vmatpush1.bf16.msra.mxu0 0
      %1019 = vmatprep.subr.bf16.mxu0 0
      %1020 = vmatpush1.bf16.msra.mxu0 0
      %1021 = vmatprep.subr.bf16.mxu0 0
      %1022 = vmatpush1.bf16.msra.mxu0 0
      %1023 = vmatprep.subr.bf16.mxu0 0
      %1024 = vmatpush1.bf16.msra.mxu0 %v1005
      %1025 = vmatprep.subr.bf16.mxu0 0
      %1026 = vmatpush1.bf16.msra.mxu0 %v1004
      %1027 = vmatprep.subr.bf16.mxu0 0
      %1028 = vmatpush2.bf16.msra.mxu0 0
      %1029 = vmatprep.subr.bf16.mxu0 0
      %1030 = vmatpush2.bf16.msra.mxu0 0
      %1031 = vmatprep.subr.bf16.mxu0 0
      %1032 = vmatpush2.bf16.msra.mxu0 0
      %1033 = vmatprep.subr.bf16.mxu0 0
      %1034 = vmatpush2.bf16.msra.mxu0 0
      %1035 = vmatprep.subr.bf16.mxu0 0
      %1036 = vmatpush2.bf16.msra.mxu0 0
      %1037 = vmatprep.subr.bf16.mxu0 0
      %1038 = vmatpush2.bf16.msra.mxu0 0
      %1039 = vmatprep.subr.bf16.mxu0 0
      %1040 = vmatpush2.bf16.msra.mxu0 0
      %1041 = vmatprep.subr.bf16.mxu0 0
      %1042 = vmatpush2.bf16.msra.mxu0 0
      %1043 = vmatprep.mubr.bf16.mxu0 0
      %1044 = vmatmul.mubr.bf16.gmra.mxu0 %v1009
      %v1045 = vpop.f32.mrf.mxu0
      %v1046 = vadd.f32 0.0, %v1045
      %v1047 = vpop.f32.mrf.mxu0
      %v1048 = vpop.f32.mrf.mxu0
      %v1049 = vadd.f32 0.0, %v1048
      %v1050 = vpop.f32.mrf.mxu0
      %1051 = vdwg.mxu0
      %v1052 = vadd.f32 %v617, %v1046
      %v1053 = vadd.f32 %v618, %v1049
      %v1054 = vld [vmem:[%s578] sm:$0x1]
      %v1056 = vlaneseq
      %v1057 = vshrl.u32 %v1056, 7
      %v1058 = vsub.s32 0, %v1057
      %v1059 = vrot.slane %v1054, %v1058
      %v1061 = vadd.f32 %v1052, %v1059
      %v1062 = vadd.f32 %v1053, %v1059
      %v1063 = vld [vmem:[%s581] sm:$0x1]
      %v1064 = vld [vmem:[%s584] sm:$0x1]
      %v1065 = vsel %vm621, %v1061, 0.0
      %1066 = vadd.xlane.f32.xlu0 %v1065
      %v1067 = vpop.xlane.xlu0 %1066
      %v1068 = vsel %vm621, %v1062, 0.0
      %1069 = vadd.xlane.f32.xlu0 %v1068
      %v1070 = vpop.xlane.xlu0 %1069
      %v1071 = vmul.f32 %v1067, %v628
      %v1072 = vmul.f32 %v1070, %v628
      %v1073 = vsub.f32 %v1061, %v1071
      %v1074 = vsub.f32 %v1062, %v1072
      %v1075 = vmul.f32 %v1073, %v1073
      %v1076 = vmul.f32 %v1074, %v1074
      %v1077 = vsel %vm621, %v1075, 0.0
      %1078 = vadd.xlane.f32.xlu0 %v1077
      %v1079 = vpop.xlane.xlu0 %1078
      %v1080 = vsel %vm621, %v1076, 0.0
      %1081 = vadd.xlane.f32.xlu0 %v1080
      %v1082 = vpop.xlane.xlu0 %1081
      %v1083 = vmul.f32 %v1079, %v628
      %v1084 = vmul.f32 %v1082, %v628
      %v1085 = vadd.f32 %v1083, 1e-05
      %v1086 = vadd.f32 %v1084, 1e-05
      %v1087 = vrsqrt.pop %v1085
      %v1088 = vrsqrt.pop %v1086
      %v1089 = vmul.f32 %v1073, %v1087
      %v1090 = vmul.f32 %v1074, %v1088
      %v1092 = vlaneseq
      %v1093 = vshrl.u32 %v1092, 7
      %v1094 = vsub.s32 0, %v1093
      %v1095 = vrot.slane %v1063, %v1094
      %v1097 = vmul.f32 %v1089, %v1095
      %v1098 = vmul.f32 %v1090, %v1095
      %v1100 = vlaneseq
      %v1101 = vshrl.u32 %v1100, 7
      %v1102 = vsub.s32 0, %v1101
      %v1103 = vrot.slane %v1064, %v1102
      %v1105 = vadd.f32 %v1097, %v1103
      %v1106 = vadd.f32 %v1098, %v1103
      %v1107 = vld [vmem:[%s589] sm:$0xf]
      %v1108 = vld [vmem:[%s589 + $0x4] sm:$0xf]
      %v1109 = vld [vmem:[%s589 + $0x8] sm:$0xf]
      %v1110 = vld [vmem:[%s589 + $0xc] sm:$0xf]
      %v1111 = vpack.c.bf16 %v1106, %v1105
      %v1112 = vld [vmem:[%s592] sm:$0x1]
      %v1114 = vlaneseq
      %v1115 = vshrl.u32 %v1114, 7
      %v1116 = vsub.s32 0, %v1115
      %v1117 = vrot.slane %v1112, %v1116
      %v1123 = vunpack.c.l.b16 %v1107
      %v1124 = vunpack.c.l.b16 %v1108
      %v1125 = vunpack.c.l.b16 %v1109
      %v1126 = vunpack.c.l.b16 %v1110
      %v1127 = vpack.c.b16 %v1124, %v1123
      %v1128 = vpack.c.b16 %v1126, %v1125
      %v1132 = vsel %vm621, %v1111, 0
      %1134 = vmatprep.subr.bf16.mxu0 0
      %1135 = vmatpush1.bf16.msra.mxu0 0
      %1136 = vmatprep.subr.bf16.mxu0 0
      %1137 = vmatpush1.bf16.msra.mxu0 0
      %1138 = vmatprep.subr.bf16.mxu0 0
      %1139 = vmatpush1.bf16.msra.mxu0 0
      %1140 = vmatprep.subr.bf16.mxu0 0
      %1141 = vmatpush1.bf16.msra.mxu0 0
      %1142 = vmatprep.subr.bf16.mxu0 0
      %1143 = vmatpush1.bf16.msra.mxu0 0
      %1144 = vmatprep.subr.bf16.mxu0 0
      %1145 = vmatpush1.bf16.msra.mxu0 0
      %1146 = vmatprep.subr.bf16.mxu0 0
      %1147 = vmatpush1.bf16.msra.mxu0 %v1128
      %1148 = vmatprep.subr.bf16.mxu0 0
      %1149 = vmatpush1.bf16.msra.mxu0 %v1127
      %1150 = vmatprep.subr.bf16.mxu0 0
      %1151 = vmatpush2.bf16.msra.mxu0 0
      %1152 = vmatprep.subr.bf16.mxu0 0
      %1153 = vmatpush2.bf16.msra.mxu0 0
      %1154 = vmatprep.subr.bf16.mxu0 0
      %1155 = vmatpush2.bf16.msra.mxu0 0
      %1156 = vmatprep.subr.bf16.mxu0 0
      %1157 = vmatpush2.bf16.msra.mxu0 0
      %1158 = vmatprep.subr.bf16.mxu0 0
      %1159 = vmatpush2.bf16.msra.mxu0 0
      %1160 = vmatprep.subr.bf16.mxu0 0
      %1161 = vmatpush2.bf16.msra.mxu0 0
      %1162 = vmatprep.subr.bf16.mxu0 0
      %1163 = vmatpush2.bf16.msra.mxu0 0
      %1164 = vmatprep.subr.bf16.mxu0 0
      %1165 = vmatpush2.bf16.msra.mxu0 0
      %1166 = vmatprep.mubr.bf16.mxu0 0
      %1167 = vmatmul.mubr.bf16.gmra.mxu0 %v1132
      %v1168 = vpop.f32.mrf.mxu0
      %v1169 = vadd.f32 %v1117, %v1168
      %v1170 = vpop.f32.mrf.mxu0
      %v1171 = vpop.f32.mrf.mxu0
      %v1172 = vadd.f32 %v1117, %v1171
      %v1173 = vpop.f32.mrf.mxu0
      %1174 = vdwg.mxu0
      %v1175 = vmul.f32 %v1169, 0.5
      %v1176 = vmul.f32 %v1172, 0.5
      %v1177 = vmul.f32 %v1169, 0.70710677
      %v1178 = vmul.f32 %v1172, 0.70710677
      %v1179 = verf.f32.pop %v1177
      %v1180 = verf.f32.pop %v1178
      %v1181 = vadd.f32 %v1179, 1.0
      %v1182 = vadd.f32 %v1180, 1.0
      %v1183 = vmul.f32 %v1175, %v1181
      %v1184 = vmul.f32 %v1176, %v1182
      %v1185 = vld [vmem:[%s597] sm:$0xf]
      %v1186 = vld [vmem:[%s597 + $0x4] sm:$0xf]
      %v1187 = vld [vmem:[%s597 + $0x8] sm:$0xf]
      %v1188 = vld [vmem:[%s597 + $0xc] sm:$0xf]
      %v1189 = vld [vmem:[%s597 + $0x10] sm:$0xf]
      %v1190 = vld [vmem:[%s597 + $0x14] sm:$0xf]
      %v1191 = vld [vmem:[%s597 + $0x18] sm:$0xf]
      %v1192 = vld [vmem:[%s597 + $0x1c] sm:$0xf]
      %v1193 = vpack.c.bf16 %v1184, %v1183
      %v1202 = vunpack.c.l.b16 %v1185
      %v1203 = vunpack.c.l.b16 %v1186
      %v1204 = vunpack.c.l.b16 %v1187
      %v1205 = vunpack.c.l.b16 %v1188
      %v1206 = vunpack.c.l.b16 %v1189
      %v1207 = vunpack.c.l.b16 %v1190
      %v1208 = vunpack.c.l.b16 %v1191
      %v1209 = vunpack.c.l.b16 %v1192
      %v1210 = vpack.c.b16 %v1203, %v1202
      %v1211 = vpack.c.b16 %v1205, %v1204
      %v1212 = vpack.c.b16 %v1207, %v1206
      %v1213 = vpack.c.b16 %v1209, %v1208
      %vm1218 = vcmask 523264
      %v1220 = vsel %vm1218, %v1193, 0
      %1222 = vmatprep.subr.bf16.mxu0 0
      %1223 = vmatpush1.bf16.msra.mxu0 0
      %1224 = vmatprep.subr.bf16.mxu0 0
      %1225 = vmatpush1.bf16.msra.mxu0 0
      %1226 = vmatprep.subr.bf16.mxu0 0
      %1227 = vmatpush1.bf16.msra.mxu0 0
      %1228 = vmatprep.subr.bf16.mxu0 0
      %1229 = vmatpush1.bf16.msra.mxu0 0
      %1230 = vmatprep.subr.bf16.mxu0 0
      %1231 = vmatpush1.bf16.msra.mxu0 %v1213
      %1232 = vmatprep.subr.bf16.mxu0 0
      %1233 = vmatpush1.bf16.msra.mxu0 %v1212
      %1234 = vmatprep.subr.bf16.mxu0 0
      %1235 = vmatpush1.bf16.msra.mxu0 %v1211
      %1236 = vmatprep.subr.bf16.mxu0 0
      %1237 = vmatpush1.bf16.msra.mxu0 %v1210
      %1238 = vmatprep.subr.bf16.mxu0 0
      %1239 = vmatpush2.bf16.msra.mxu0 0
      %1240 = vmatprep.subr.bf16.mxu0 0
      %1241 = vmatpush2.bf16.msra.mxu0 0
      %1242 = vmatprep.subr.bf16.mxu0 0
      %1243 = vmatpush2.bf16.msra.mxu0 0
      %1244 = vmatprep.subr.bf16.mxu0 0
      %1245 = vmatpush2.bf16.msra.mxu0 0
      %1246 = vmatprep.subr.bf16.mxu0 0
      %1247 = vmatpush2.bf16.msra.mxu0 0
      %1248 = vmatprep.subr.bf16.mxu0 0
      %1249 = vmatpush2.bf16.msra.mxu0 0
      %1250 = vmatprep.subr.bf16.mxu0 0
      %1251 = vmatpush2.bf16.msra.mxu0 0
      %1252 = vmatprep.subr.bf16.mxu0 0
      %1253 = vmatpush2.bf16.msra.mxu0 0
      %1254 = vmatprep.mubr.bf16.mxu0 0
      %1255 = vmatmul.mubr.bf16.gmra.mxu0 %v1220
      %v1256 = vpop.f32.mrf.mxu0
      %v1257 = vadd.f32 0.0, %v1256
      %v1258 = vpop.f32.mrf.mxu0
      %v1259 = vpop.f32.mrf.mxu0
      %v1260 = vadd.f32 0.0, %v1259
      %v1261 = vpop.f32.mrf.mxu0
      %1262 = vdwg.mxu0
      %v1263 = vadd.f32 %v1061, %v1257
      %v1264 = vadd.f32 %v1062, %v1260
      %v1265 = vld [vmem:[%s600] sm:$0x1]
      %v1267 = vlaneseq
      %v1268 = vshrl.u32 %v1267, 7
      %v1269 = vsub.s32 0, %v1268
      %v1270 = vrot.slane %v1265, %v1269
      %v1272 = vadd.f32 %v1263, %v1270
      %v1273 = vadd.f32 %v1264, %v1270
      %1274 = vst.msk [vmem:[#allocation2] sm:$0xff] %vm621, %v1272
      %1275 = vst.msk [vmem:[#allocation2 + $0x8] sm:$0xff] %vm621, %v1273
      %p1276 = scmp.eq.s32.totalorder %s28, 1
      // Predicated region
      $region73: #{vit_forward_pallas.1} parent=67 // pred_check
        %p1277 = pneg %p1276
      $region74: #{vit_forward_pallas.1} parent=67 // pred_check_branch
        %1279 = sbr.rel (%p1277) target = $region76
      $region75: #{vit_forward_pallas.1} parent=67 // pred_region
        %1280 = vst.msk [vmem:[%s605] sm:$0xff] %vm621, %v1272
        %1281 = vst.msk [vmem:[%s605 + $0x8] sm:$0xff] %vm621, %v1273
      $region76: #{vit_forward_pallas.1} parent=67 // pred_fallthru
        _
      %s1282 = smul.u32 2, %s27
      %p1283 = scmp.lt.s32.totalorder %s1282, 3
      %s1284 = scalar_select %p1283, %s1282, 3
      %s1285 = smul.addr %s1284, 8
      %s1286 = scalar_lea.vmem %s12, %s1285
      // Predicated region
      $region77: #{vit_forward_pallas.1} parent=67 // pred_check
        %p1287 = pneg %p365
      $region78: #{vit_forward_pallas.1} parent=67 // pred_check_branch
        %1289 = sbr.rel (%p1287) target = $region80
      $region79: #{vit_forward_pallas.1} parent=67 // pred_region
        %s1290 = smul.u32 2, %s27
      $region80: #{vit_forward_pallas.1} parent=67 // pred_fallthru
        _
    $region68: #{vit_forward_pallas.1} parent=5 // pred_fallthru
      _
    %p1291 = scmp.le.s32.totalorder 2, %s18
    // Predicated region
    $region81: #{vit_forward_pallas.1} parent=5 // pred_check
      %p1292 = pneg %p1291
    $region82: #{vit_forward_pallas.1} parent=5 // pred_check_branch
      %1294 = sbr.rel (%p1292) target = $region84
    $region83: #{vit_forward_pallas.1} parent=5 // pred_region
      %s1295 = ssub.s32 %s18, 2
      // Predicated region
      $region85: #{vit_forward_pallas.1} parent=83 // pred_check
        %p1296 = pneg %p371
      $region86: #{vit_forward_pallas.1} parent=83 // pred_check_branch
        %1298 = sbr.rel (%p1296) target = $region88
      $region87: #{vit_forward_pallas.1} parent=83 // pred_region
        %s1299 = smul.u32 2, %s29
        %p1300 = scmp.lt.s32.totalorder %s1299, 3
        %s1301 = scalar_select %p1300, %s1299, 3
        %s1302 = smul.addr %s1301, 8
        %s1303 = scalar_lea.vmem %s12, %s1302
      $region88: #{vit_forward_pallas.1} parent=83 // pred_fallthru
        _
    $region84: #{vit_forward_pallas.1} parent=5 // pred_fallthru
      _
  $region6: #{vit_forward_pallas.1} parent=0 // loop_footer
    %s22 = sadd.s32 1, %s18
  $region7: #{vit_forward_pallas.1} parent=0 // loop_footer_branch
    %17 = sbr.rel target = $region3
  $region8: #{vit_forward_pallas.1} parent=0 // loop_exit
    _

</llo_original>
